<compile_context>
chip_gen: v5e
topology: v5e:2x2
jax: 0.10.0
libtpu: 0.0.40
codegen_flags: <defaults>
</compile_context>

<pallas_src>
import functools
import math

import jax
import jax.numpy as jnp
from jax.experimental import pallas as pl
from jax.experimental.pallas import tpu as pltpu

_MIB = 1024 * 1024


# --------------------------------------------------------------------------------------
# Kernel
# --------------------------------------------------------------------------------------
def _mha_kernel(q_ref, k_ref, v_ref,
                wq_ref, wk_ref, wv_ref, wo_ref,
                bq_ref, bk_ref, bv_ref, bo_ref,
                o_ref, *, num_heads, head_dim):
    """Fused multi-head attention for one batch block. Everything is batch-first (bn, T, E)."""
    bn, L, E = q_ref.shape
    S = k_ref.shape[1]
    bf16 = jnp.bfloat16
    f32 = jnp.float32

    def project(x_ref, w_ref, b_ref, rows):
        # (bn, rows, E) -> collapse leading dims -> bf16 MXU matmul, f32 accumulation + f32 bias.
        # (rows is a multiple of 8 in the demo, so the collapse is a pure re-indexing.)
        x = x_ref[...].astype(bf16).reshape(bn * rows, E)
        y = jnp.dot(x, w_ref[...], preferred_element_type=f32) + b_ref[...]
        return y.reshape(bn, rows, E)

    qp = project(q_ref, wq_ref, bq_ref, L)     # (bn, L, E) f32; 1/sqrt(D) folded into wq/bq
    kp = project(k_ref, wk_ref, bk_ref, S)     # (bn, S, E) f32
    vp = project(v_ref, wv_ref, bv_ref, S)     # (bn, S, E) f32

    # Per-head attention with 3-D batched einsums (contracting last dims, no K^T relayout).
    # Contexts are collected and concatenated once along lanes -> one lane-dense slab, no
    # per-head masked stores, no scratch.
    ctx_heads = []
    for h in range(num_heads):
        lo = h * head_dim
        hi = lo + head_dim
        qh = qp[:, :, lo:hi].astype(bf16)      # (bn, L, D)
        kh = kp[:, :, lo:hi].astype(bf16)      # (bn, S, D)
        vh = vp[:, :, lo:hi].astype(bf16)      # (bn, S, D)

        s = jnp.einsum('bld,bsd->bls', qh, kh, preferred_element_type=f32)   # (bn, L, S)
        m = jnp.max(s, axis=-1, keepdims=True)
        p = jnp.exp(s - m)                                                   # softmax in f32
        denom = jnp.sum(p, axis=-1, keepdims=True)
        p = (p * pl.reciprocal(denom, approx=False)).astype(bf16)            # exact reciprocal
        ctx_heads.append(jnp.einsum('bls,bsd->bld', p, vh, preferred_element_type=f32))

    # Single lane-dense context slab -> one large-K bf16 output-projection matmul.
    ctx = jnp.concatenate(ctx_heads, axis=-1).astype(bf16).reshape(bn * L, E)
    out = jnp.dot(ctx, wo_ref[...], preferred_element_type=f32) + bo_ref[...]
    o_ref[...] = out.reshape(bn, L, E).astype(o_ref.dtype)


# --------------------------------------------------------------------------------------
# Tiling / VMEM heuristics
# --------------------------------------------------------------------------------------
def _vmem_limit_bytes():
    """Generation-aware scoped-VMEM limit (v5e/v6e: 128 MiB physical, v7x: 64 MiB)."""
    cap = 128 * _MIB
    try:
        cap = int(pltpu.get_tpu_info().vmem_capacity_bytes)
    except Exception:
        pass
    if cap >= 100 * _MIB:
        return 96 * _MIB                      # v5e / v6e: allow big tiles
    return min(cap * 3 // 4, 48 * _MIB)       # v7x (and smaller): leave headroom


def _estimate_vmem_bytes(bn, L, S, E):
    """Rough per-step VMEM footprint for a batch block of size bn (with a 1.3x fudge)."""
    io = 2 * bn * (L + 2 * S) * E * 4          # q/k/v input blocks, double-buffered (f32)
    io += 2 * bn * L * E * 4                   # output block, double-buffered
    weights = 4 * E * E * 2 + 4 * E * 4        # bf16 weights + f32 biases
    proj = bn * (L + 2 * S) * E * (4 + 2)      # f32 projections + bf16 casts
    scores = 2 * bn * L * S * 4                # scores + probabilities (one head at a time)
    ctx = bn * L * E * (4 + 2 + 4)             # head contexts + bf16 slab + f32 out
    return int(1.3 * (io + weights + proj + scores + ctx))


def _select_batch_block(N, L, S, E, vmem_budget):
    """Largest divisor of N fitting the VMEM budget; keep >=2 grid steps when N>=2 so
    dimension_semantics=('parallel',) can shard across both TensorCores on v7x."""
    for bn in range(N, 0, -1):
        if N % bn != 0:
            continue
        if N >= 2 and N // bn < 2:
            continue
        if _estimate_vmem_bytes(bn, L, S, E) <= vmem_budget:
            return bn
    return 1


# --------------------------------------------------------------------------------------
# pallas_call builder + wrapper
# --------------------------------------------------------------------------------------
def _build_pallas_call(bn, nb, L, S, E, num_heads, head_dim, out_dtype, vmem_limit,
                       weights_single_buffered):
    kernel = functools.partial(_mha_kernel, num_heads=num_heads, head_dim=head_dim)
    w_kwargs = dict(pipeline_mode=pl.Buffered(1)) if weights_single_buffered else {}
    w_spec = pl.BlockSpec((E, E), lambda b: (0, 0), **w_kwargs)   # constant-index weights
    b_spec = pl.BlockSpec((1, E), lambda b: (0, 0), **w_kwargs)   # constant-index biases
    return pl.pallas_call(
        kernel,
        out_shape=jax.ShapeDtypeStruct((nb * bn, L, E), out_dtype),
        grid_spec=pltpu.PrefetchScalarGridSpec(
            num_scalar_prefetch=0,
            grid=(nb,),
            in_specs=[
                pl.BlockSpec((bn, L, E), lambda b: (b, 0, 0)),    # q (batch-first)
                pl.BlockSpec((bn, S, E), lambda b: (b, 0, 0)),    # k
                pl.BlockSpec((bn, S, E), lambda b: (b, 0, 0)),    # v
                w_spec, w_spec, w_spec, w_spec,                   # wq wk wv wo (bf16)
                b_spec, b_spec, b_spec, b_spec,                   # bq bk bv bo (f32)
            ],
            out_specs=pl.BlockSpec((bn, L, E), lambda b: (b, 0, 0)),
        ),
        compiler_params=pltpu.CompilerParams(
            dimension_semantics=("parallel",),
            vmem_limit_bytes=vmem_limit,
        ),
    )


def prepare_params(params, num_heads):
    """One-time weight prep: transpose for right-multiplication, fold the 1/sqrt(D) query
    scale into wq/bq, cast weights to bf16 (biases stay f32, added post-accumulation)."""
    E = params["wq"].shape[0]
    head_dim = E // num_heads
    scale = 1.0 / math.sqrt(head_dim)
    return {
        "wq": (params["wq"].T * scale).astype(jnp.bfloat16),
        "wk": params["wk"].T.astype(jnp.bfloat16),
        "wv": params["wv"].T.astype(jnp.bfloat16),
        "wo": params["wo"].T.astype(jnp.bfloat16),
        "bq": (params["bq"] * scale).reshape(1, E).astype(jnp.float32),
        "bk": params["bk"].reshape(1, E).astype(jnp.float32),
        "bv": params["bv"].reshape(1, E).astype(jnp.float32),
        "bo": params["bo"].reshape(1, E).astype(jnp.float32),
    }


def dynamic_attention(query, key, value, prepared, num_heads):
    """query: (L, N, E), key/value: (S, N, E) (PyTorch seq-first). Returns (L, N, E)."""
    L, N, E = query.shape
    S = key.shape[0]
    assert E % num_heads == 0
    head_dim = E // num_heads

    # Batch-first once in the wrapper (pure layout plumbing) -> zero in-kernel transposes.
    q_bf = jnp.transpose(query, (1, 0, 2))   # (N, L, E)
    k_bf = jnp.transpose(key, (1, 0, 2))     # (N, S, E)
    v_bf = jnp.transpose(value, (1, 0, 2))   # (N, S, E)

    vmem_limit = _vmem_limit_bytes()
    bn = _select_batch_block(N, L, S, E, vmem_limit)
    nb = N // bn

    args = (q_bf, k_bf, v_bf,
            prepared["wq"], prepared["wk"], prepared["wv"], prepared["wo"],
            prepared["bq"], prepared["bk"], prepared["bv"], prepared["bo"])

    try:
        out_bf = _build_pallas_call(bn, nb, L, S, E, num_heads, head_dim, query.dtype,
                                    vmem_limit, weights_single_buffered=True)(*args)
    except Exception:
        # pl.Buffered(1) on constant blocks is a VMEM-only optimization; fall back cleanly
        # if this jax/Mosaic version rejects single-buffered pipeline_mode.
        out_bf = _build_pallas_call(bn, nb, L, S, E, num_heads, head_dim, query.dtype,
                                    vmem_limit, weights_single_buffered=False)(*args)

    return jnp.transpose(out_bf, (1, 0, 2))   # back to (L, N, E)


def init_params(key, embed_dim):
    # Deterministic synthetic init mirroring nn.MultiheadAttention parameter shapes:
    # in_proj_weight (3E, E) split into wq/wk/wv, in_proj_bias (3E,), out_proj (E, E) + (E,).
    ks = jax.random.split(key, 4)
    bound = 1.0 / math.sqrt(embed_dim)
    wq = jax.random.uniform(ks[0], (embed_dim, embed_dim), jnp.float32, -bound, bound)
    wk = jax.random.uniform(ks[1], (embed_dim, embed_dim), jnp.float32, -bound, bound)
    wv = jax.random.uniform(ks[2], (embed_dim, embed_dim), jnp.float32, -bound, bound)
    wo = jax.random.uniform(ks[3], (embed_dim, embed_dim), jnp.float32, -bound, bound)
    zeros = jnp.zeros((embed_dim,), jnp.float32)
    return {"wq": wq, "wk": wk, "wv": wv, "wo": wo,
            "bq": zeros, "bk": zeros, "bv": zeros, "bo": zeros}


if __name__ == "__main__":
    L = 8          # target sequence length
    S = 8          # source sequence length
    N = 2          # batch
    E = 32         # embed_dim (input_dim)
    H = 4          # num_heads

    root = jax.random.PRNGKey(0)
    kq, kk, kv, kp = jax.random.split(root, 4)
    query = jax.random.normal(kq, (L, N, E), jnp.float32)
    key_ = jax.random.normal(kk, (S, N, E), jnp.float32)
    value = jax.random.normal(kv, (S, N, E), jnp.float32)

    params = init_params(kp, E)
    prepared = prepare_params(params, num_heads=H)   # one-time transpose/scale/cast of weights

    out = dynamic_attention(query, key_, value, prepared, num_heads=H)
    jax.block_until_ready(out)
    assert out.shape == (L, N, E)
    assert bool(jnp.all(jnp.isfinite(out)))
    print("KERNEL_OK")
</pallas_src>

<mosaic_0001>
module attributes {stable_mosaic.version = 11 : i64} {
  func.func @_mha_kernel(%arg0: i32, %arg1: memref<1x8x32xf32, #tpu.memory_space<vmem>>, %arg2: memref<1x8x32xf32, #tpu.memory_space<vmem>>, %arg3: memref<1x8x32xf32, #tpu.memory_space<vmem>>, %arg4: memref<32x32xbf16, #tpu.memory_space<vmem>>, %arg5: memref<32x32xbf16, #tpu.memory_space<vmem>>, %arg6: memref<32x32xbf16, #tpu.memory_space<vmem>>, %arg7: memref<32x32xbf16, #tpu.memory_space<vmem>>, %arg8: memref<1x32xf32, #tpu.memory_space<vmem>>, %arg9: memref<1x32xf32, #tpu.memory_space<vmem>>, %arg10: memref<1x32xf32, #tpu.memory_space<vmem>>, %arg11: memref<1x32xf32, #tpu.memory_space<vmem>>, %arg12: memref<1x8x32xf32, #tpu.memory_space<vmem>>) attributes {dimension_semantics = [#tpu.dimension_semantics<parallel>], iteration_bounds = array<i64: 2>, scalar_prefetch = 0 : i64, scratch_operands = 0 : i64, tpu.core_type = #tpu.core_type<tc>, window_params = [{transform_indices = @transform_0, window_bounds = array<i64: 1, 8, 32>}, {transform_indices = @transform_1, window_bounds = array<i64: 1, 8, 32>}, {transform_indices = @transform_2, window_bounds = array<i64: 1, 8, 32>}, {pipeline_mode = #tpu.pipeline_mode<synchronous>, transform_indices = @transform_3, window_bounds = array<i64: 32, 32>}, {pipeline_mode = #tpu.pipeline_mode<synchronous>, transform_indices = @transform_4, window_bounds = array<i64: 32, 32>}, {pipeline_mode = #tpu.pipeline_mode<synchronous>, transform_indices = @transform_5, window_bounds = array<i64: 32, 32>}, {pipeline_mode = #tpu.pipeline_mode<synchronous>, transform_indices = @transform_6, window_bounds = array<i64: 32, 32>}, {pipeline_mode = #tpu.pipeline_mode<synchronous>, transform_indices = @transform_7, window_bounds = array<i64: 1, 32>}, {pipeline_mode = #tpu.pipeline_mode<synchronous>, transform_indices = @transform_8, window_bounds = array<i64: 1, 32>}, {pipeline_mode = #tpu.pipeline_mode<synchronous>, transform_indices = @transform_9, window_bounds = array<i64: 1, 32>}, {pipeline_mode = #tpu.pipeline_mode<synchronous>, transform_indices = @transform_10, window_bounds = array<i64: 1, 32>}, {transform_indices = @transform_11, window_bounds = array<i64: 1, 8, 32>}]} {
    %c0 = arith.constant 0 : index
    %c0_0 = arith.constant 0 : index
    %c0_1 = arith.constant 0 : index
    %0 = vector.load %arg1[%c0, %c0_0, %c0_1] : memref<1x8x32xf32, #tpu.memory_space<vmem>>, vector<1x8x32xf32>
    %1 = arith.truncf %0 : vector<1x8x32xf32> to vector<1x8x32xbf16>
    %2 = vector.shape_cast %1 : vector<1x8x32xbf16> to vector<8x32xbf16>
    %c0_2 = arith.constant 0 : index
    %c0_3 = arith.constant 0 : index
    %3 = vector.load %arg4[%c0_2, %c0_3] : memref<32x32xbf16, #tpu.memory_space<vmem>>, vector<32x32xbf16>
    %cst = arith.constant dense<0.000000e+00> : vector<8x32xf32>
    %4 = tpu.matmul %2, %3, %cst {dimension_numbers = #tpu.dot_dimension_numbers<[1], [0], [0], [1], [0, 0, 1, 1], [], []>} : vector<8x32xbf16>, vector<32x32xbf16>, vector<8x32xf32> -> vector<8x32xf32>
    %c0_4 = arith.constant 0 : index
    %c0_5 = arith.constant 0 : index
    %5 = vector.load %arg8[%c0_4, %c0_5] : memref<1x32xf32, #tpu.memory_space<vmem>>, vector<1x32xf32>
    %6 = vector.broadcast %5 : vector<1x32xf32> to vector<8x32xf32>
    %7 = arith.addf %4, %6 : vector<8x32xf32>
    %8 = vector.shape_cast %7 : vector<8x32xf32> to vector<1x8x32xf32>
    %c0_6 = arith.constant 0 : index
    %c0_7 = arith.constant 0 : index
    %c0_8 = arith.constant 0 : index
    %9 = vector.load %arg2[%c0_6, %c0_7, %c0_8] : memref<1x8x32xf32, #tpu.memory_space<vmem>>, vector<1x8x32xf32>
    %10 = arith.truncf %9 : vector<1x8x32xf32> to vector<1x8x32xbf16>
    %11 = vector.shape_cast %10 : vector<1x8x32xbf16> to vector<8x32xbf16>
    %c0_9 = arith.constant 0 : index
    %c0_10 = arith.constant 0 : index
    %12 = vector.load %arg5[%c0_9, %c0_10] : memref<32x32xbf16, #tpu.memory_space<vmem>>, vector<32x32xbf16>
    %cst_11 = arith.constant dense<0.000000e+00> : vector<8x32xf32>
    %13 = tpu.matmul %11, %12, %cst_11 {dimension_numbers = #tpu.dot_dimension_numbers<[1], [0], [0], [1], [0, 0, 1, 1], [], []>} : vector<8x32xbf16>, vector<32x32xbf16>, vector<8x32xf32> -> vector<8x32xf32>
    %c0_12 = arith.constant 0 : index
    %c0_13 = arith.constant 0 : index
    %14 = vector.load %arg9[%c0_12, %c0_13] : memref<1x32xf32, #tpu.memory_space<vmem>>, vector<1x32xf32>
    %15 = vector.broadcast %14 : vector<1x32xf32> to vector<8x32xf32>
    %16 = arith.addf %13, %15 : vector<8x32xf32>
    %17 = vector.shape_cast %16 : vector<8x32xf32> to vector<1x8x32xf32>
    %c0_14 = arith.constant 0 : index
    %c0_15 = arith.constant 0 : index
    %c0_16 = arith.constant 0 : index
    %18 = vector.load %arg3[%c0_14, %c0_15, %c0_16] : memref<1x8x32xf32, #tpu.memory_space<vmem>>, vector<1x8x32xf32>
    %19 = arith.truncf %18 : vector<1x8x32xf32> to vector<1x8x32xbf16>
    %20 = vector.shape_cast %19 : vector<1x8x32xbf16> to vector<8x32xbf16>
    %c0_17 = arith.constant 0 : index
    %c0_18 = arith.constant 0 : index
    %21 = vector.load %arg6[%c0_17, %c0_18] : memref<32x32xbf16, #tpu.memory_space<vmem>>, vector<32x32xbf16>
    %cst_19 = arith.constant dense<0.000000e+00> : vector<8x32xf32>
    %22 = tpu.matmul %20, %21, %cst_19 {dimension_numbers = #tpu.dot_dimension_numbers<[1], [0], [0], [1], [0, 0, 1, 1], [], []>} : vector<8x32xbf16>, vector<32x32xbf16>, vector<8x32xf32> -> vector<8x32xf32>
    %c0_20 = arith.constant 0 : index
    %c0_21 = arith.constant 0 : index
    %23 = vector.load %arg10[%c0_20, %c0_21] : memref<1x32xf32, #tpu.memory_space<vmem>>, vector<1x32xf32>
    %24 = vector.broadcast %23 : vector<1x32xf32> to vector<8x32xf32>
    %25 = arith.addf %22, %24 : vector<8x32xf32>
    %26 = vector.shape_cast %25 : vector<8x32xf32> to vector<1x8x32xf32>
    %27 = vector.extract_strided_slice %8 {offsets = [0, 0, 0], sizes = [1, 8, 8], strides = [1, 1, 1]} : vector<1x8x32xf32> to vector<1x8x8xf32>
    %28 = arith.truncf %27 : vector<1x8x8xf32> to vector<1x8x8xbf16>
    %29 = vector.extract_strided_slice %17 {offsets = [0, 0, 0], sizes = [1, 8, 8], strides = [1, 1, 1]} : vector<1x8x32xf32> to vector<1x8x8xf32>
    %30 = arith.truncf %29 : vector<1x8x8xf32> to vector<1x8x8xbf16>
    %31 = vector.extract_strided_slice %26 {offsets = [0, 0, 0], sizes = [1, 8, 8], strides = [1, 1, 1]} : vector<1x8x32xf32> to vector<1x8x8xf32>
    %32 = arith.truncf %31 : vector<1x8x8xf32> to vector<1x8x8xbf16>
    "tpu.trace_start"() <{level = 10 : i32, message = "bld,bsd->bls"}> : () -> ()
    %cst_22 = arith.constant dense<0.000000e+00> : vector<1x8x8xf32>
    %33 = tpu.matmul %28, %30, %cst_22 {dimension_numbers = #tpu.dot_dimension_numbers<[2], [2], [1], [1], [0, 0, 0, 1, 1, 1], [0], [0]>} : vector<1x8x8xbf16>, vector<1x8x8xbf16>, vector<1x8x8xf32> -> vector<1x8x8xf32>
    "tpu.trace_stop"() : () -> ()
    %cst_23 = arith.constant dense<0xFF800000> : vector<1x8xf32>
    %34 = vector.multi_reduction <maximumf>, %33, %cst_23 [2] : vector<1x8x8xf32> to vector<1x8xf32>
    %35 = vector.shape_cast %34 : vector<1x8xf32> to vector<1x8x1xf32>
    %36 = vector.broadcast %35 : vector<1x8x1xf32> to vector<1x8x8xf32>
    %37 = arith.subf %33, %36 : vector<1x8x8xf32>
    %38 = math.exp %37 : vector<1x8x8xf32>
    %cst_24 = arith.constant dense<0.000000e+00> : vector<1x8xf32>
    %39 = vector.multi_reduction <add>, %38, %cst_24 [2] : vector<1x8x8xf32> to vector<1x8xf32>
    %40 = vector.shape_cast %39 : vector<1x8xf32> to vector<1x8x1xf32>
    %41 = tpu.reciprocal %40 : vector<1x8x1xf32> -> vector<1x8x1xf32>
    %42 = vector.broadcast %41 : vector<1x8x1xf32> to vector<1x8x8xf32>
    %43 = arith.mulf %38, %42 : vector<1x8x8xf32>
    %44 = arith.truncf %43 : vector<1x8x8xf32> to vector<1x8x8xbf16>
    "tpu.trace_start"() <{level = 10 : i32, message = "bls,bsd->bld"}> : () -> ()
    %cst_25 = arith.constant dense<0.000000e+00> : vector<1x8x8xf32>
    %45 = tpu.matmul %44, %32, %cst_25 {dimension_numbers = #tpu.dot_dimension_numbers<[2], [1], [1], [2], [0, 0, 0, 1, 1, 2], [0], [0]>} : vector<1x8x8xbf16>, vector<1x8x8xbf16>, vector<1x8x8xf32> -> vector<1x8x8xf32>
    "tpu.trace_stop"() : () -> ()
    %46 = vector.extract_strided_slice %8 {offsets = [0, 0, 8], sizes = [1, 8, 8], strides = [1, 1, 1]} : vector<1x8x32xf32> to vector<1x8x8xf32>
    %47 = arith.truncf %46 : vector<1x8x8xf32> to vector<1x8x8xbf16>
    %48 = vector.extract_strided_slice %17 {offsets = [0, 0, 8], sizes = [1, 8, 8], strides = [1, 1, 1]} : vector<1x8x32xf32> to vector<1x8x8xf32>
    %49 = arith.truncf %48 : vector<1x8x8xf32> to vector<1x8x8xbf16>
    %50 = vector.extract_strided_slice %26 {offsets = [0, 0, 8], sizes = [1, 8, 8], strides = [1, 1, 1]} : vector<1x8x32xf32> to vector<1x8x8xf32>
    %51 = arith.truncf %50 : vector<1x8x8xf32> to vector<1x8x8xbf16>
    "tpu.trace_start"() <{level = 10 : i32, message = "bld,bsd->bls"}> : () -> ()
    %cst_26 = arith.constant dense<0.000000e+00> : vector<1x8x8xf32>
    %52 = tpu.matmul %47, %49, %cst_26 {dimension_numbers = #tpu.dot_dimension_numbers<[2], [2], [1], [1], [0, 0, 0, 1, 1, 1], [0], [0]>} : vector<1x8x8xbf16>, vector<1x8x8xbf16>, vector<1x8x8xf32> -> vector<1x8x8xf32>
    "tpu.trace_stop"() : () -> ()
    %cst_27 = arith.constant dense<0xFF800000> : vector<1x8xf32>
    %53 = vector.multi_reduction <maximumf>, %52, %cst_27 [2] : vector<1x8x8xf32> to vector<1x8xf32>
    %54 = vector.shape_cast %53 : vector<1x8xf32> to vector<1x8x1xf32>
    %55 = vector.broadcast %54 : vector<1x8x1xf32> to vector<1x8x8xf32>
    %56 = arith.subf %52, %55 : vector<1x8x8xf32>
    %57 = math.exp %56 : vector<1x8x8xf32>
    %cst_28 = arith.constant dense<0.000000e+00> : vector<1x8xf32>
    %58 = vector.multi_reduction <add>, %57, %cst_28 [2] : vector<1x8x8xf32> to vector<1x8xf32>
    %59 = vector.shape_cast %58 : vector<1x8xf32> to vector<1x8x1xf32>
    %60 = tpu.reciprocal %59 : vector<1x8x1xf32> -> vector<1x8x1xf32>
    %61 = vector.broadcast %60 : vector<1x8x1xf32> to vector<1x8x8xf32>
    %62 = arith.mulf %57, %61 : vector<1x8x8xf32>
    %63 = arith.truncf %62 : vector<1x8x8xf32> to vector<1x8x8xbf16>
    "tpu.trace_start"() <{level = 10 : i32, message = "bls,bsd->bld"}> : () -> ()
    %cst_29 = arith.constant dense<0.000000e+00> : vector<1x8x8xf32>
    %64 = tpu.matmul %63, %51, %cst_29 {dimension_numbers = #tpu.dot_dimension_numbers<[2], [1], [1], [2], [0, 0, 0, 1, 1, 2], [0], [0]>} : vector<1x8x8xbf16>, vector<1x8x8xbf16>, vector<1x8x8xf32> -> vector<1x8x8xf32>
    "tpu.trace_stop"() : () -> ()
    %65 = vector.extract_strided_slice %8 {offsets = [0, 0, 16], sizes = [1, 8, 8], strides = [1, 1, 1]} : vector<1x8x32xf32> to vector<1x8x8xf32>
    %66 = arith.truncf %65 : vector<1x8x8xf32> to vector<1x8x8xbf16>
    %67 = vector.extract_strided_slice %17 {offsets = [0, 0, 16], sizes = [1, 8, 8], strides = [1, 1, 1]} : vector<1x8x32xf32> to vector<1x8x8xf32>
    %68 = arith.truncf %67 : vector<1x8x8xf32> to vector<1x8x8xbf16>
    %69 = vector.extract_strided_slice %26 {offsets = [0, 0, 16], sizes = [1, 8, 8], strides = [1, 1, 1]} : vector<1x8x32xf32> to vector<1x8x8xf32>
    %70 = arith.truncf %69 : vector<1x8x8xf32> to vector<1x8x8xbf16>
    "tpu.trace_start"() <{level = 10 : i32, message = "bld,bsd->bls"}> : () -> ()
    %cst_30 = arith.constant dense<0.000000e+00> : vector<1x8x8xf32>
    %71 = tpu.matmul %66, %68, %cst_30 {dimension_numbers = #tpu.dot_dimension_numbers<[2], [2], [1], [1], [0, 0, 0, 1, 1, 1], [0], [0]>} : vector<1x8x8xbf16>, vector<1x8x8xbf16>, vector<1x8x8xf32> -> vector<1x8x8xf32>
    "tpu.trace_stop"() : () -> ()
    %cst_31 = arith.constant dense<0xFF800000> : vector<1x8xf32>
    %72 = vector.multi_reduction <maximumf>, %71, %cst_31 [2] : vector<1x8x8xf32> to vector<1x8xf32>
    %73 = vector.shape_cast %72 : vector<1x8xf32> to vector<1x8x1xf32>
    %74 = vector.broadcast %73 : vector<1x8x1xf32> to vector<1x8x8xf32>
    %75 = arith.subf %71, %74 : vector<1x8x8xf32>
    %76 = math.exp %75 : vector<1x8x8xf32>
    %cst_32 = arith.constant dense<0.000000e+00> : vector<1x8xf32>
    %77 = vector.multi_reduction <add>, %76, %cst_32 [2] : vector<1x8x8xf32> to vector<1x8xf32>
    %78 = vector.shape_cast %77 : vector<1x8xf32> to vector<1x8x1xf32>
    %79 = tpu.reciprocal %78 : vector<1x8x1xf32> -> vector<1x8x1xf32>
    %80 = vector.broadcast %79 : vector<1x8x1xf32> to vector<1x8x8xf32>
    %81 = arith.mulf %76, %80 : vector<1x8x8xf32>
    %82 = arith.truncf %81 : vector<1x8x8xf32> to vector<1x8x8xbf16>
    "tpu.trace_start"() <{level = 10 : i32, message = "bls,bsd->bld"}> : () -> ()
    %cst_33 = arith.constant dense<0.000000e+00> : vector<1x8x8xf32>
    %83 = tpu.matmul %82, %70, %cst_33 {dimension_numbers = #tpu.dot_dimension_numbers<[2], [1], [1], [2], [0, 0, 0, 1, 1, 2], [0], [0]>} : vector<1x8x8xbf16>, vector<1x8x8xbf16>, vector<1x8x8xf32> -> vector<1x8x8xf32>
    "tpu.trace_stop"() : () -> ()
    %84 = vector.extract_strided_slice %8 {offsets = [0, 0, 24], sizes = [1, 8, 8], strides = [1, 1, 1]} : vector<1x8x32xf32> to vector<1x8x8xf32>
    %85 = arith.truncf %84 : vector<1x8x8xf32> to vector<1x8x8xbf16>
    %86 = vector.extract_strided_slice %17 {offsets = [0, 0, 24], sizes = [1, 8, 8], strides = [1, 1, 1]} : vector<1x8x32xf32> to vector<1x8x8xf32>
    %87 = arith.truncf %86 : vector<1x8x8xf32> to vector<1x8x8xbf16>
    %88 = vector.extract_strided_slice %26 {offsets = [0, 0, 24], sizes = [1, 8, 8], strides = [1, 1, 1]} : vector<1x8x32xf32> to vector<1x8x8xf32>
    %89 = arith.truncf %88 : vector<1x8x8xf32> to vector<1x8x8xbf16>
    "tpu.trace_start"() <{level = 10 : i32, message = "bld,bsd->bls"}> : () -> ()
    %cst_34 = arith.constant dense<0.000000e+00> : vector<1x8x8xf32>
    %90 = tpu.matmul %85, %87, %cst_34 {dimension_numbers = #tpu.dot_dimension_numbers<[2], [2], [1], [1], [0, 0, 0, 1, 1, 1], [0], [0]>} : vector<1x8x8xbf16>, vector<1x8x8xbf16>, vector<1x8x8xf32> -> vector<1x8x8xf32>
    "tpu.trace_stop"() : () -> ()
    %cst_35 = arith.constant dense<0xFF800000> : vector<1x8xf32>
    %91 = vector.multi_reduction <maximumf>, %90, %cst_35 [2] : vector<1x8x8xf32> to vector<1x8xf32>
    %92 = vector.shape_cast %91 : vector<1x8xf32> to vector<1x8x1xf32>
    %93 = vector.broadcast %92 : vector<1x8x1xf32> to vector<1x8x8xf32>
    %94 = arith.subf %90, %93 : vector<1x8x8xf32>
    %95 = math.exp %94 : vector<1x8x8xf32>
    %cst_36 = arith.constant dense<0.000000e+00> : vector<1x8xf32>
    %96 = vector.multi_reduction <add>, %95, %cst_36 [2] : vector<1x8x8xf32> to vector<1x8xf32>
    %97 = vector.shape_cast %96 : vector<1x8xf32> to vector<1x8x1xf32>
    %98 = tpu.reciprocal %97 : vector<1x8x1xf32> -> vector<1x8x1xf32>
    %99 = vector.broadcast %98 : vector<1x8x1xf32> to vector<1x8x8xf32>
    %100 = arith.mulf %95, %99 : vector<1x8x8xf32>
    %101 = arith.truncf %100 : vector<1x8x8xf32> to vector<1x8x8xbf16>
    "tpu.trace_start"() <{level = 10 : i32, message = "bls,bsd->bld"}> : () -> ()
    %cst_37 = arith.constant dense<0.000000e+00> : vector<1x8x8xf32>
    %102 = tpu.matmul %101, %89, %cst_37 {dimension_numbers = #tpu.dot_dimension_numbers<[2], [1], [1], [2], [0, 0, 0, 1, 1, 2], [0], [0]>} : vector<1x8x8xbf16>, vector<1x8x8xbf16>, vector<1x8x8xf32> -> vector<1x8x8xf32>
    "tpu.trace_stop"() : () -> ()
    %103 = tpu.concatenate %45, %64, %83, %102 in 2 : vector<1x8x8xf32>, vector<1x8x8xf32>, vector<1x8x8xf32>, vector<1x8x8xf32> -> vector<1x8x32xf32>
    %104 = arith.truncf %103 : vector<1x8x32xf32> to vector<1x8x32xbf16>
    %105 = vector.shape_cast %104 : vector<1x8x32xbf16> to vector<8x32xbf16>
    %c0_38 = arith.constant 0 : index
    %c0_39 = arith.constant 0 : index
    %106 = vector.load %arg7[%c0_38, %c0_39] : memref<32x32xbf16, #tpu.memory_space<vmem>>, vector<32x32xbf16>
    %cst_40 = arith.constant dense<0.000000e+00> : vector<8x32xf32>
    %107 = tpu.matmul %105, %106, %cst_40 {dimension_numbers = #tpu.dot_dimension_numbers<[1], [0], [0], [1], [0, 0, 1, 1], [], []>} : vector<8x32xbf16>, vector<32x32xbf16>, vector<8x32xf32> -> vector<8x32xf32>
    %c0_41 = arith.constant 0 : index
    %c0_42 = arith.constant 0 : index
    %108 = vector.load %arg11[%c0_41, %c0_42] : memref<1x32xf32, #tpu.memory_space<vmem>>, vector<1x32xf32>
    %109 = vector.broadcast %108 : vector<1x32xf32> to vector<8x32xf32>
    %110 = arith.addf %107, %109 : vector<8x32xf32>
    %111 = vector.shape_cast %110 : vector<8x32xf32> to vector<1x8x32xf32>
    %c0_43 = arith.constant 0 : index
    %c0_44 = arith.constant 0 : index
    %c0_45 = arith.constant 0 : index
    %112 = vector.load %arg12[%c0_43, %c0_44, %c0_45] : memref<1x8x32xf32, #tpu.memory_space<vmem>>, vector<1x8x32xf32>
    tpu.vector_store %arg12[%c0_43, %c0_44, %c0_45], %111 {strides = array<i32>} : memref<1x8x32xf32, #tpu.memory_space<vmem>>, vector<1x8x32xf32>,
    return
  }
  func.func @transform_0(%arg0: i32) -> (i32, i32, i32) {
    %c0_i32 = arith.constant 0 : i32
    %c0_i32_0 = arith.constant 0 : i32
    %c0_i32_1 = arith.constant 0 : i32
    return %arg0, %c0_i32, %c0_i32_0 : i32, i32, i32
  }
  func.func @transform_1(%arg0: i32) -> (i32, i32, i32) {
    %c0_i32 = arith.constant 0 : i32
    %c0_i32_0 = arith.constant 0 : i32
    %c0_i32_1 = arith.constant 0 : i32
    return %arg0, %c0_i32, %c0_i32_0 : i32, i32, i32
  }
  func.func @transform_2(%arg0: i32) -> (i32, i32, i32) {
    %c0_i32 = arith.constant 0 : i32
    %c0_i32_0 = arith.constant 0 : i32
    %c0_i32_1 = arith.constant 0 : i32
    return %arg0, %c0_i32, %c0_i32_0 : i32, i32, i32
  }
  func.func @transform_3(%arg0: i32) -> (i32, i32) {
    %c0_i32 = arith.constant 0 : i32
    %c0_i32_0 = arith.constant 0 : i32
    %c0_i32_1 = arith.constant 0 : i32
    return %c0_i32, %c0_i32_0 : i32, i32
  }
  func.func @transform_4(%arg0: i32) -> (i32, i32) {
    %c0_i32 = arith.constant 0 : i32
    %c0_i32_0 = arith.constant 0 : i32
    %c0_i32_1 = arith.constant 0 : i32
    return %c0_i32, %c0_i32_0 : i32, i32
  }
  func.func @transform_5(%arg0: i32) -> (i32, i32) {
    %c0_i32 = arith.constant 0 : i32
    %c0_i32_0 = arith.constant 0 : i32
    %c0_i32_1 = arith.constant 0 : i32
    return %c0_i32, %c0_i32_0 : i32, i32
  }
  func.func @transform_6(%arg0: i32) -> (i32, i32) {
    %c0_i32 = arith.constant 0 : i32
    %c0_i32_0 = arith.constant 0 : i32
    %c0_i32_1 = arith.constant 0 : i32
    return %c0_i32, %c0_i32_0 : i32, i32
  }
  func.func @transform_7(%arg0: i32) -> (i32, i32) {
    %c0_i32 = arith.constant 0 : i32
    %c0_i32_0 = arith.constant 0 : i32
    %c0_i32_1 = arith.constant 0 : i32
    return %c0_i32, %c0_i32_0 : i32, i32
  }
  func.func @transform_8(%arg0: i32) -> (i32, i32) {
    %c0_i32 = arith.constant 0 : i32
    %c0_i32_0 = arith.constant 0 : i32
    %c0_i32_1 = arith.constant 0 : i32
    return %c0_i32, %c0_i32_0 : i32, i32
  }
  func.func @transform_9(%arg0: i32) -> (i32, i32) {
    %c0_i32 = arith.constant 0 : i32
    %c0_i32_0 = arith.constant 0 : i32
    %c0_i32_1 = arith.constant 0 : i32
    return %c0_i32, %c0_i32_0 : i32, i32
  }
  func.func @transform_10(%arg0: i32) -> (i32, i32) {
    %c0_i32 = arith.constant 0 : i32
    %c0_i32_0 = arith.constant 0 : i32
    %c0_i32_1 = arith.constant 0 : i32
    return %c0_i32, %c0_i32_0 : i32, i32
  }
  func.func @transform_11(%arg0: i32) -> (i32, i32, i32) {
    %c0_i32 = arith.constant 0 : i32
    %c0_i32_0 = arith.constant 0 : i32
    %c0_i32_1 = arith.constant 0 : i32
    return %arg0, %c0_i32, %c0_i32_0 : i32, i32, i32
  }
}

module attributes {stable_mosaic.version = 11 : i64} {
  func.func @_mha_kernel(%arg0: i32, %arg1: memref<1x8x32xf32, #tpu.memory_space<vmem>>, %arg2: memref<1x8x32xf32, #tpu.memory_space<vmem>>, %arg3: memref<1x8x32xf32, #tpu.memory_space<vmem>>, %arg4: memref<32x32xbf16, #tpu.memory_space<vmem>>, %arg5: memref<32x32xbf16, #tpu.memory_space<vmem>>, %arg6: memref<32x32xbf16, #tpu.memory_space<vmem>>, %arg7: memref<32x32xbf16, #tpu.memory_space<vmem>>, %arg8: memref<1x32xf32, #tpu.memory_space<vmem>>, %arg9: memref<1x32xf32, #tpu.memory_space<vmem>>, %arg10: memref<1x32xf32, #tpu.memory_space<vmem>>, %arg11: memref<1x32xf32, #tpu.memory_space<vmem>>, %arg12: memref<1x8x32xf32, #tpu.memory_space<vmem>>) attributes {dimension_semantics = [#tpu.dimension_semantics<parallel>], iteration_bounds = array<i64: 2>, scalar_prefetch = 0 : i64, scratch_operands = 0 : i64, tpu.core_type = #tpu.core_type<tc>, window_params = [{transform_indices = @transform_0, window_bounds = array<i64: 1, 8, 32>}, {transform_indices = @transform_1, window_bounds = array<i64: 1, 8, 32>}, {transform_indices = @transform_2, window_bounds = array<i64: 1, 8, 32>}, {pipeline_mode = #tpu.pipeline_mode<synchronous>, transform_indices = @transform_3, window_bounds = array<i64: 32, 32>}, {pipeline_mode = #tpu.pipeline_mode<synchronous>, transform_indices = @transform_4, window_bounds = array<i64: 32, 32>}, {pipeline_mode = #tpu.pipeline_mode<synchronous>, transform_indices = @transform_5, window_bounds = array<i64: 32, 32>}, {pipeline_mode = #tpu.pipeline_mode<synchronous>, transform_indices = @transform_6, window_bounds = array<i64: 32, 32>}, {pipeline_mode = #tpu.pipeline_mode<synchronous>, transform_indices = @transform_7, window_bounds = array<i64: 1, 32>}, {pipeline_mode = #tpu.pipeline_mode<synchronous>, transform_indices = @transform_8, window_bounds = array<i64: 1, 32>}, {pipeline_mode = #tpu.pipeline_mode<synchronous>, transform_indices = @transform_9, window_bounds = array<i64: 1, 32>}, {pipeline_mode = #tpu.pipeline_mode<synchronous>, transform_indices = @transform_10, window_bounds = array<i64: 1, 32>}, {transform_indices = @transform_11, window_bounds = array<i64: 1, 8, 32>}]} {
    %c0 = arith.constant 0 : index
    %c0_0 = arith.constant 0 : index
    %c0_1 = arith.constant 0 : index
    %0 = vector.load %arg1[%c0, %c0_0, %c0_1] : memref<1x8x32xf32, #tpu.memory_space<vmem>>, vector<1x8x32xf32>
    %1 = arith.truncf %0 : vector<1x8x32xf32> to vector<1x8x32xbf16>
    %2 = vector.shape_cast %1 : vector<1x8x32xbf16> to vector<8x32xbf16>
    %c0_2 = arith.constant 0 : index
    %c0_3 = arith.constant 0 : index
    %3 = vector.load %arg4[%c0_2, %c0_3] : memref<32x32xbf16, #tpu.memory_space<vmem>>, vector<32x32xbf16>
    %cst = arith.constant dense<0.000000e+00> : vector<8x32xf32>
    %4 = tpu.matmul %2, %3, %cst {dimension_numbers = #tpu.dot_dimension_numbers<[1], [0], [0], [1], [0, 0, 1, 1], [], []>} : vector<8x32xbf16>, vector<32x32xbf16>, vector<8x32xf32> -> vector<8x32xf32>
    %c0_4 = arith.constant 0 : index
    %c0_5 = arith.constant 0 : index
    %5 = vector.load %arg8[%c0_4, %c0_5] : memref<1x32xf32, #tpu.memory_space<vmem>>, vector<1x32xf32>
    %6 = vector.broadcast %5 : vector<1x32xf32> to vector<8x32xf32>
    %7 = arith.addf %4, %6 : vector<8x32xf32>
    %8 = vector.shape_cast %7 : vector<8x32xf32> to vector<1x8x32xf32>
    %c0_6 = arith.constant 0 : index
    %c0_7 = arith.constant 0 : index
    %c0_8 = arith.constant 0 : index
    %9 = vector.load %arg2[%c0_6, %c0_7, %c0_8] : memref<1x8x32xf32, #tpu.memory_space<vmem>>, vector<1x8x32xf32>
    %10 = arith.truncf %9 : vector<1x8x32xf32> to vector<1x8x32xbf16>
    %11 = vector.shape_cast %10 : vector<1x8x32xbf16> to vector<8x32xbf16>
    %c0_9 = arith.constant 0 : index
    %c0_10 = arith.constant 0 : index
    %12 = vector.load %arg5[%c0_9, %c0_10] : memref<32x32xbf16, #tpu.memory_space<vmem>>, vector<32x32xbf16>
    %cst_11 = arith.constant dense<0.000000e+00> : vector<8x32xf32>
    %13 = tpu.matmul %11, %12, %cst_11 {dimension_numbers = #tpu.dot_dimension_numbers<[1], [0], [0], [1], [0, 0, 1, 1], [], []>} : vector<8x32xbf16>, vector<32x32xbf16>, vector<8x32xf32> -> vector<8x32xf32>
    %c0_12 = arith.constant 0 : index
    %c0_13 = arith.constant 0 : index
    %14 = vector.load %arg9[%c0_12, %c0_13] : memref<1x32xf32, #tpu.memory_space<vmem>>, vector<1x32xf32>
    %15 = vector.broadcast %14 : vector<1x32xf32> to vector<8x32xf32>
    %16 = arith.addf %13, %15 : vector<8x32xf32>
    %17 = vector.shape_cast %16 : vector<8x32xf32> to vector<1x8x32xf32>
    %c0_14 = arith.constant 0 : index
    %c0_15 = arith.constant 0 : index
    %c0_16 = arith.constant 0 : index
    %18 = vector.load %arg3[%c0_14, %c0_15, %c0_16] : memref<1x8x32xf32, #tpu.memory_space<vmem>>, vector<1x8x32xf32>
    %19 = arith.truncf %18 : vector<1x8x32xf32> to vector<1x8x32xbf16>
    %20 = vector.shape_cast %19 : vector<1x8x32xbf16> to vector<8x32xbf16>
    %c0_17 = arith.constant 0 : index
    %c0_18 = arith.constant 0 : index
    %21 = vector.load %arg6[%c0_17, %c0_18] : memref<32x32xbf16, #tpu.memory_space<vmem>>, vector<32x32xbf16>
    %cst_19 = arith.constant dense<0.000000e+00> : vector<8x32xf32>
    %22 = tpu.matmul %20, %21, %cst_19 {dimension_numbers = #tpu.dot_dimension_numbers<[1], [0], [0], [1], [0, 0, 1, 1], [], []>} : vector<8x32xbf16>, vector<32x32xbf16>, vector<8x32xf32> -> vector<8x32xf32>
    %c0_20 = arith.constant 0 : index
    %c0_21 = arith.constant 0 : index
    %23 = vector.load %arg10[%c0_20, %c0_21] : memref<1x32xf32, #tpu.memory_space<vmem>>, vector<1x32xf32>
    %24 = vector.broadcast %23 : vector<1x32xf32> to vector<8x32xf32>
    %25 = arith.addf %22, %24 : vector<8x32xf32>
    %26 = vector.shape_cast %25 : vector<8x32xf32> to vector<1x8x32xf32>
    %27 = vector.extract_strided_slice %8 {offsets = [0, 0, 0], sizes = [1, 8, 8], strides = [1, 1, 1]} : vector<1x8x32xf32> to vector<1x8x8xf32>
    %28 = arith.truncf %27 : vector<1x8x8xf32> to vector<1x8x8xbf16>
    %29 = vector.extract_strided_slice %17 {offsets = [0, 0, 0], sizes = [1, 8, 8], strides = [1, 1, 1]} : vector<1x8x32xf32> to vector<1x8x8xf32>
    %30 = arith.truncf %29 : vector<1x8x8xf32> to vector<1x8x8xbf16>
    %31 = vector.extract_strided_slice %26 {offsets = [0, 0, 0], sizes = [1, 8, 8], strides = [1, 1, 1]} : vector<1x8x32xf32> to vector<1x8x8xf32>
    %32 = arith.truncf %31 : vector<1x8x8xf32> to vector<1x8x8xbf16>
    "tpu.trace_start"() <{level = 10 : i32, message = "bld,bsd->bls"}> : () -> ()
    %cst_22 = arith.constant dense<0.000000e+00> : vector<1x8x8xf32>
    %33 = tpu.matmul %28, %30, %cst_22 {dimension_numbers = #tpu.dot_dimension_numbers<[2], [2], [1], [1], [0, 0, 0, 1, 1, 1], [0], [0]>} : vector<1x8x8xbf16>, vector<1x8x8xbf16>, vector<1x8x8xf32> -> vector<1x8x8xf32>
    "tpu.trace_stop"() : () -> ()
    %cst_23 = arith.constant dense<0xFF800000> : vector<1x8xf32>
    %34 = vector.multi_reduction <maximumf>, %33, %cst_23 [2] : vector<1x8x8xf32> to vector<1x8xf32>
    %35 = vector.shape_cast %34 : vector<1x8xf32> to vector<1x8x1xf32>
    %36 = vector.broadcast %35 : vector<1x8x1xf32> to vector<1x8x8xf32>
    %37 = arith.subf %33, %36 : vector<1x8x8xf32>
    %38 = math.exp %37 : vector<1x8x8xf32>
    %cst_24 = arith.constant dense<0.000000e+00> : vector<1x8xf32>
    %39 = vector.multi_reduction <add>, %38, %cst_24 [2] : vector<1x8x8xf32> to vector<1x8xf32>
    %40 = vector.shape_cast %39 : vector<1x8xf32> to vector<1x8x1xf32>
    %41 = tpu.reciprocal %40 : vector<1x8x1xf32> -> vector<1x8x1xf32>
    %42 = vector.broadcast %41 : vector<1x8x1xf32> to vector<1x8x8xf32>
    %43 = arith.mulf %38, %42 : vector<1x8x8xf32>
    %44 = arith.truncf %43 : vector<1x8x8xf32> to vector<1x8x8xbf16>
    "tpu.trace_start"() <{level = 10 : i32, message = "bls,bsd->bld"}> : () -> ()
    %cst_25 = arith.constant dense<0.000000e+00> : vector<1x8x8xf32>
    %45 = tpu.matmul %44, %32, %cst_25 {dimension_numbers = #tpu.dot_dimension_numbers<[2], [1], [1], [2], [0, 0, 0, 1, 1, 2], [0], [0]>} : vector<1x8x8xbf16>, vector<1x8x8xbf16>, vector<1x8x8xf32> -> vector<1x8x8xf32>
    "tpu.trace_stop"() : () -> ()
    %46 = vector.extract_strided_slice %8 {offsets = [0, 0, 8], sizes = [1, 8, 8], strides = [1, 1, 1]} : vector<1x8x32xf32> to vector<1x8x8xf32>
    %47 = arith.truncf %46 : vector<1x8x8xf32> to vector<1x8x8xbf16>
    %48 = vector.extract_strided_slice %17 {offsets = [0, 0, 8], sizes = [1, 8, 8], strides = [1, 1, 1]} : vector<1x8x32xf32> to vector<1x8x8xf32>
    %49 = arith.truncf %48 : vector<1x8x8xf32> to vector<1x8x8xbf16>
    %50 = vector.extract_strided_slice %26 {offsets = [0, 0, 8], sizes = [1, 8, 8], strides = [1, 1, 1]} : vector<1x8x32xf32> to vector<1x8x8xf32>
    %51 = arith.truncf %50 : vector<1x8x8xf32> to vector<1x8x8xbf16>
    "tpu.trace_start"() <{level = 10 : i32, message = "bld,bsd->bls"}> : () -> ()
    %cst_26 = arith.constant dense<0.000000e+00> : vector<1x8x8xf32>
    %52 = tpu.matmul %47, %49, %cst_26 {dimension_numbers = #tpu.dot_dimension_numbers<[2], [2], [1], [1], [0, 0, 0, 1, 1, 1], [0], [0]>} : vector<1x8x8xbf16>, vector<1x8x8xbf16>, vector<1x8x8xf32> -> vector<1x8x8xf32>
    "tpu.trace_stop"() : () -> ()
    %cst_27 = arith.constant dense<0xFF800000> : vector<1x8xf32>
    %53 = vector.multi_reduction <maximumf>, %52, %cst_27 [2] : vector<1x8x8xf32> to vector<1x8xf32>
    %54 = vector.shape_cast %53 : vector<1x8xf32> to vector<1x8x1xf32>
    %55 = vector.broadcast %54 : vector<1x8x1xf32> to vector<1x8x8xf32>
    %56 = arith.subf %52, %55 : vector<1x8x8xf32>
    %57 = math.exp %56 : vector<1x8x8xf32>
    %cst_28 = arith.constant dense<0.000000e+00> : vector<1x8xf32>
    %58 = vector.multi_reduction <add>, %57, %cst_28 [2] : vector<1x8x8xf32> to vector<1x8xf32>
    %59 = vector.shape_cast %58 : vector<1x8xf32> to vector<1x8x1xf32>
    %60 = tpu.reciprocal %59 : vector<1x8x1xf32> -> vector<1x8x1xf32>
    %61 = vector.broadcast %60 : vector<1x8x1xf32> to vector<1x8x8xf32>
    %62 = arith.mulf %57, %61 : vector<1x8x8xf32>
    %63 = arith.truncf %62 : vector<1x8x8xf32> to vector<1x8x8xbf16>
    "tpu.trace_start"() <{level = 10 : i32, message = "bls,bsd->bld"}> : () -> ()
    %cst_29 = arith.constant dense<0.000000e+00> : vector<1x8x8xf32>
    %64 = tpu.matmul %63, %51, %cst_29 {dimension_numbers = #tpu.dot_dimension_numbers<[2], [1], [1], [2], [0, 0, 0, 1, 1, 2], [0], [0]>} : vector<1x8x8xbf16>, vector<1x8x8xbf16>, vector<1x8x8xf32> -> vector<1x8x8xf32>
    "tpu.trace_stop"() : () -> ()
    %65 = vector.extract_strided_slice %8 {offsets = [0, 0, 16], sizes = [1, 8, 8], strides = [1, 1, 1]} : vector<1x8x32xf32> to vector<1x8x8xf32>
    %66 = arith.truncf %65 : vector<1x8x8xf32> to vector<1x8x8xbf16>
    %67 = vector.extract_strided_slice %17 {offsets = [0, 0, 16], sizes = [1, 8, 8], strides = [1, 1, 1]} : vector<1x8x32xf32> to vector<1x8x8xf32>
    %68 = arith.truncf %67 : vector<1x8x8xf32> to vector<1x8x8xbf16>
    %69 = vector.extract_strided_slice %26 {offsets = [0, 0, 16], sizes = [1, 8, 8], strides = [1, 1, 1]} : vector<1x8x32xf32> to vector<1x8x8xf32>
    %70 = arith.truncf %69 : vector<1x8x8xf32> to vector<1x8x8xbf16>
    "tpu.trace_start"() <{level = 10 : i32, message = "bld,bsd->bls"}> : () -> ()
    %cst_30 = arith.constant dense<0.000000e+00> : vector<1x8x8xf32>
    %71 = tpu.matmul %66, %68, %cst_30 {dimension_numbers = #tpu.dot_dimension_numbers<[2], [2], [1], [1], [0, 0, 0, 1, 1, 1], [0], [0]>} : vector<1x8x8xbf16>, vector<1x8x8xbf16>, vector<1x8x8xf32> -> vector<1x8x8xf32>
    "tpu.trace_stop"() : () -> ()
    %cst_31 = arith.constant dense<0xFF800000> : vector<1x8xf32>
    %72 = vector.multi_reduction <maximumf>, %71, %cst_31 [2] : vector<1x8x8xf32> to vector<1x8xf32>
    %73 = vector.shape_cast %72 : vector<1x8xf32> to vector<1x8x1xf32>
    %74 = vector.broadcast %73 : vector<1x8x1xf32> to vector<1x8x8xf32>
    %75 = arith.subf %71, %74 : vector<1x8x8xf32>
    %76 = math.exp %75 : vector<1x8x8xf32>
    %cst_32 = arith.constant dense<0.000000e+00> : vector<1x8xf32>
    %77 = vector.multi_reduction <add>, %76, %cst_32 [2] : vector<1x8x8xf32> to vector<1x8xf32>
    %78 = vector.shape_cast %77 : vector<1x8xf32> to vector<1x8x1xf32>
    %79 = tpu.reciprocal %78 : vector<1x8x1xf32> -> vector<1x8x1xf32>
    %80 = vector.broadcast %79 : vector<1x8x1xf32> to vector<1x8x8xf32>
    %81 = arith.mulf %76, %80 : vector<1x8x8xf32>
    %82 = arith.truncf %81 : vector<1x8x8xf32> to vector<1x8x8xbf16>
    "tpu.trace_start"() <{level = 10 : i32, message = "bls,bsd->bld"}> : () -> ()
    %cst_33 = arith.constant dense<0.000000e+00> : vector<1x8x8xf32>
    %83 = tpu.matmul %82, %70, %cst_33 {dimension_numbers = #tpu.dot_dimension_numbers<[2], [1], [1], [2], [0, 0, 0, 1, 1, 2], [0], [0]>} : vector<1x8x8xbf16>, vector<1x8x8xbf16>, vector<1x8x8xf32> -> vector<1x8x8xf32>
    "tpu.trace_stop"() : () -> ()
    %84 = vector.extract_strided_slice %8 {offsets = [0, 0, 24], sizes = [1, 8, 8], strides = [1, 1, 1]} : vector<1x8x32xf32> to vector<1x8x8xf32>
    %85 = arith.truncf %84 : vector<1x8x8xf32> to vector<1x8x8xbf16>
    %86 = vector.extract_strided_slice %17 {offsets = [0, 0, 24], sizes = [1, 8, 8], strides = [1, 1, 1]} : vector<1x8x32xf32> to vector<1x8x8xf32>
    %87 = arith.truncf %86 : vector<1x8x8xf32> to vector<1x8x8xbf16>
    %88 = vector.extract_strided_slice %26 {offsets = [0, 0, 24], sizes = [1, 8, 8], strides = [1, 1, 1]} : vector<1x8x32xf32> to vector<1x8x8xf32>
    %89 = arith.truncf %88 : vector<1x8x8xf32> to vector<1x8x8xbf16>
    "tpu.trace_start"() <{level = 10 : i32, message = "bld,bsd->bls"}> : () -> ()
    %cst_34 = arith.constant dense<0.000000e+00> : vector<1x8x8xf32>
    %90 = tpu.matmul %85, %87, %cst_34 {dimension_numbers = #tpu.dot_dimension_numbers<[2], [2], [1], [1], [0, 0, 0, 1, 1, 1], [0], [0]>} : vector<1x8x8xbf16>, vector<1x8x8xbf16>, vector<1x8x8xf32> -> vector<1x8x8xf32>
    "tpu.trace_stop"() : () -> ()
    %cst_35 = arith.constant dense<0xFF800000> : vector<1x8xf32>
    %91 = vector.multi_reduction <maximumf>, %90, %cst_35 [2] : vector<1x8x8xf32> to vector<1x8xf32>
    %92 = vector.shape_cast %91 : vector<1x8xf32> to vector<1x8x1xf32>
    %93 = vector.broadcast %92 : vector<1x8x1xf32> to vector<1x8x8xf32>
    %94 = arith.subf %90, %93 : vector<1x8x8xf32>
    %95 = math.exp %94 : vector<1x8x8xf32>
    %cst_36 = arith.constant dense<0.000000e+00> : vector<1x8xf32>
    %96 = vector.multi_reduction <add>, %95, %cst_36 [2] : vector<1x8x8xf32> to vector<1x8xf32>
    %97 = vector.shape_cast %96 : vector<1x8xf32> to vector<1x8x1xf32>
    %98 = tpu.reciprocal %97 : vector<1x8x1xf32> -> vector<1x8x1xf32>
    %99 = vector.broadcast %98 : vector<1x8x1xf32> to vector<1x8x8xf32>
    %100 = arith.mulf %95, %99 : vector<1x8x8xf32>
    %101 = arith.truncf %100 : vector<1x8x8xf32> to vector<1x8x8xbf16>
    "tpu.trace_start"() <{level = 10 : i32, message = "bls,bsd->bld"}> : () -> ()
    %cst_37 = arith.constant dense<0.000000e+00> : vector<1x8x8xf32>
    %102 = tpu.matmul %101, %89, %cst_37 {dimension_numbers = #tpu.dot_dimension_numbers<[2], [1], [1], [2], [0, 0, 0, 1, 1, 2], [0], [0]>} : vector<1x8x8xbf16>, vector<1x8x8xbf16>, vector<1x8x8xf32> -> vector<1x8x8xf32>
    "tpu.trace_stop"() : () -> ()
    %103 = tpu.concatenate %45, %64, %83, %102 in 2 : vector<1x8x8xf32>, vector<1x8x8xf32>, vector<1x8x8xf32>, vector<1x8x8xf32> -> vector<1x8x32xf32>
    %104 = arith.truncf %103 : vector<1x8x32xf32> to vector<1x8x32xbf16>
    %105 = vector.shape_cast %104 : vector<1x8x32xbf16> to vector<8x32xbf16>
    %c0_38 = arith.constant 0 : index
    %c0_39 = arith.constant 0 : index
    %106 = vector.load %arg7[%c0_38, %c0_39] : memref<32x32xbf16, #tpu.memory_space<vmem>>, vector<32x32xbf16>
    %cst_40 = arith.constant dense<0.000000e+00> : vector<8x32xf32>
    %107 = tpu.matmul %105, %106, %cst_40 {dimension_numbers = #tpu.dot_dimension_numbers<[1], [0], [0], [1], [0, 0, 1, 1], [], []>} : vector<8x32xbf16>, vector<32x32xbf16>, vector<8x32xf32> -> vector<8x32xf32>
    %c0_41 = arith.constant 0 : index
    %c0_42 = arith.constant 0 : index
    %108 = vector.load %arg11[%c0_41, %c0_42] : memref<1x32xf32, #tpu.memory_space<vmem>>, vector<1x32xf32>
    %109 = vector.broadcast %108 : vector<1x32xf32> to vector<8x32xf32>
    %110 = arith.addf %107, %109 : vector<8x32xf32>
    %111 = vector.shape_cast %110 : vector<8x32xf32> to vector<1x8x32xf32>
    %c0_43 = arith.constant 0 : index
    %c0_44 = arith.constant 0 : index
    %c0_45 = arith.constant 0 : index
    %112 = vector.load %arg12[%c0_43, %c0_44, %c0_45] : memref<1x8x32xf32, #tpu.memory_space<vmem>>, vector<1x8x32xf32>
    tpu.vector_store %arg12[%c0_43, %c0_44, %c0_45], %111 {strides = array<i32>} : memref<1x8x32xf32, #tpu.memory_space<vmem>>, vector<1x8x32xf32>,
    return
  }
  func.func @transform_0(%arg0: i32) -> (i32, i32, i32) {
    %c0_i32 = arith.constant 0 : i32
    %c0_i32_0 = arith.constant 0 : i32
    %c0_i32_1 = arith.constant 0 : i32
    return %arg0, %c0_i32, %c0_i32_0 : i32, i32, i32
  }
  func.func @transform_1(%arg0: i32) -> (i32, i32, i32) {
    %c0_i32 = arith.constant 0 : i32
    %c0_i32_0 = arith.constant 0 : i32
    %c0_i32_1 = arith.constant 0 : i32
    return %arg0, %c0_i32, %c0_i32_0 : i32, i32, i32
  }
  func.func @transform_2(%arg0: i32) -> (i32, i32, i32) {
    %c0_i32 = arith.constant 0 : i32
    %c0_i32_0 = arith.constant 0 : i32
    %c0_i32_1 = arith.constant 0 : i32
    return %arg0, %c0_i32, %c0_i32_0 : i32, i32, i32
  }
  func.func @transform_3(%arg0: i32) -> (i32, i32) {
    %c0_i32 = arith.constant 0 : i32
    %c0_i32_0 = arith.constant 0 : i32
    %c0_i32_1 = arith.constant 0 : i32
    return %c0_i32, %c0_i32_0 : i32, i32
  }
  func.func @transform_4(%arg0: i32) -> (i32, i32) {
    %c0_i32 = arith.constant 0 : i32
    %c0_i32_0 = arith.constant 0 : i32
    %c0_i32_1 = arith.constant 0 : i32
    return %c0_i32, %c0_i32_0 : i32, i32
  }
  func.func @transform_5(%arg0: i32) -> (i32, i32) {
    %c0_i32 = arith.constant 0 : i32
    %c0_i32_0 = arith.constant 0 : i32
    %c0_i32_1 = arith.constant 0 : i32
    return %c0_i32, %c0_i32_0 : i32, i32
  }
  func.func @transform_6(%arg0: i32) -> (i32, i32) {
    %c0_i32 = arith.constant 0 : i32
    %c0_i32_0 = arith.constant 0 : i32
    %c0_i32_1 = arith.constant 0 : i32
    return %c0_i32, %c0_i32_0 : i32, i32
  }
  func.func @transform_7(%arg0: i32) -> (i32, i32) {
    %c0_i32 = arith.constant 0 : i32
    %c0_i32_0 = arith.constant 0 : i32
    %c0_i32_1 = arith.constant 0 : i32
    return %c0_i32, %c0_i32_0 : i32, i32
  }
  func.func @transform_8(%arg0: i32) -> (i32, i32) {
    %c0_i32 = arith.constant 0 : i32
    %c0_i32_0 = arith.constant 0 : i32
    %c0_i32_1 = arith.constant 0 : i32
    return %c0_i32, %c0_i32_0 : i32, i32
  }
  func.func @transform_9(%arg0: i32) -> (i32, i32) {
    %c0_i32 = arith.constant 0 : i32
    %c0_i32_0 = arith.constant 0 : i32
    %c0_i32_1 = arith.constant 0 : i32
    return %c0_i32, %c0_i32_0 : i32, i32
  }
  func.func @transform_10(%arg0: i32) -> (i32, i32) {
    %c0_i32 = arith.constant 0 : i32
    %c0_i32_0 = arith.constant 0 : i32
    %c0_i32_1 = arith.constant 0 : i32
    return %c0_i32, %c0_i32_0 : i32, i32
  }
  func.func @transform_11(%arg0: i32) -> (i32, i32, i32) {
    %c0_i32 = arith.constant 0 : i32
    %c0_i32_0 = arith.constant 0 : i32
    %c0_i32_1 = arith.constant 0 : i32
    return %arg0, %c0_i32, %c0_i32_0 : i32, i32, i32
  }
}

</mosaic_0001>

<llo_original>
// kernel: tpu_custom_call.1
$region0: #{tpu_custom_call.1}
  #allocation0 [shape = 'u32[]', space=smem, size = 0x4, offset = 0x4, fixed_abs, tag = 'smem constant byte address 0x4 - core index']
  #allocation1 [shape = 'u32[72,128]{1,0:T(1,128)}', space=vmem, size = 0x9000, scoped, tag = 'internal scratch']
  %s0 = inlined_call_operand.hbm [shape: f32[2,8,32], index: 0, kind: input, shape index: {}]
  %s1 = inlined_call_operand.hbm [shape: f32[2,8,32], index: 1, kind: input, shape index: {}]
  %s2 = inlined_call_operand.hbm [shape: f32[2,8,32], index: 2, kind: input, shape index: {}]
  %s3 = inlined_call_operand.hbm [shape: bf16[32,32], index: 3, kind: input, shape index: {}]
  %s4 = inlined_call_operand.hbm [shape: bf16[32,32], index: 4, kind: input, shape index: {}]
  %s5 = inlined_call_operand.hbm [shape: bf16[32,32], index: 5, kind: input, shape index: {}]
  %s6 = inlined_call_operand.hbm [shape: bf16[32,32], index: 6, kind: input, shape index: {}]
  %s7 = inlined_call_operand.vmem [shape: f32[1,32], index: 7, kind: input, shape index: {}]
  %s8 = inlined_call_operand.vmem [shape: f32[1,32], index: 8, kind: input, shape index: {}]
  %s9 = inlined_call_operand.vmem [shape: f32[1,32], index: 9, kind: input, shape index: {}]
  %s10 = inlined_call_operand.vmem [shape: f32[1,32], index: 10, kind: input, shape index: {}]
  %s11 = inlined_call_operand.hbm [shape: f32[2,8,32], index: 11, kind: output, shape index: {}]
  %s12 = sld [smem:[#allocation0]]
  $region105: #{tpu_custom_call.1} parent=0
    _
  %s14 = ssub.s32 1, %s12
  %s15 = scalar_select 0, %s14, %s12
  $region1: #{tpu_custom_call.1} parent=0
    #allocation2 [shape = 'u8[8192]{0}', space=vmem, size = 0x2000, scoped, tag = 'input window, operand 0']
    #allocation3 [shape = 's32[2]{0}', space=sflag, size = 0x8, scoped, tag = 'scoped memory for tpu_custom_call.1']
    #allocation4 [shape = 's32[2]{0}', space=sflag, size = 0x8, scoped, tag = 'scoped memory for tpu_custom_call.1']
    #allocation5 [shape = 'u8[8192]{0}', space=vmem, size = 0x2000, scoped, tag = 'input window, operand 1']
    #allocation6 [shape = 's32[2]{0}', space=sflag, size = 0x8, scoped, tag = 'scoped memory for tpu_custom_call.1']
    #allocation7 [shape = 'u8[8192]{0}', space=vmem, size = 0x2000, scoped, tag = 'input window, operand 2']
    #allocation8 [shape = 'u8[8192]{0}', space=vmem, size = 0x2000, scoped, tag = 'input window, operand 3, single buffered']
    #allocation9 [shape = 's32[1]{0}', space=sflag, size = 0x4, scoped, tag = 'scoped memory for tpu_custom_call.1']
    #allocation10 [shape = 'u8[8192]{0}', space=vmem, size = 0x2000, scoped, tag = 'input window, operand 4, single buffered']
    #allocation11 [shape = 'u8[8192]{0}', space=vmem, size = 0x2000, scoped, tag = 'input window, operand 5, single buffered']
    #allocation12 [shape = 's32[1]{0}', space=sflag, size = 0x4, scoped, tag = 'scoped memory for tpu_custom_call.1']
    #allocation13 [shape = 'u8[8192]{0}', space=vmem, size = 0x2000, scoped, tag = 'input window, operand 6, single buffered']
    #allocation14 [shape = 'u8[8192]{0}', space=vmem, size = 0x2000, scoped, tag = 'output window, operand 0']
    %16 = vsyncpa [#allocation3], 0
    %s17 = scalar_lea.sflag [#allocation3], 1
    %18 = vsyncpa %s17, 0
    %19 = vsyncpa [#allocation6], 0
    %s20 = scalar_lea.sflag [#allocation6], 1
    %21 = vsyncpa %s20, 0
    %22 = vsyncpa [#allocation9], 0
    %23 = vsyncpa [#allocation12], 0
    %24 = vsyncpa [#allocation4], 0
    %s25 = scalar_lea.sflag [#allocation4], 1
    %26 = vsyncpa %s25, 0
    loop: start=0, step=1, limit=4
    $region2: #{tpu_custom_call.1} parent=1 // loop_pre_header
      _
    $region3: #{tpu_custom_call.1} parent=1 // loop_header
      %s28 = sphi 0, %s32
      %p29 = scmp.ge.s32.totalorder %s28, 4
      %s38 = sphi 0, %s40
      %s41 = sphi 0, %s38
      %s42 = sphi 0, %s41
      %s58 = sphi 0, %s42
      %s64 = sphi 0, %s66
      %s67 = sphi 0, %s64
      %s68 = sphi 0, %s67
      %s84 = sphi 0, %s68
      %s90 = sphi 0, %s92
      %s93 = sphi 0, %s90
      %s94 = sphi 0, %s93
      %s110 = sphi 0, %s94
      %s114 = sphi 0, %s114
      %s116 = sphi 0, %s114
      %s117 = sphi 0, %s116
      %s131 = sphi 0, %s117
      %s135 = sphi 0, %s135
      %s137 = sphi 0, %s135
      %s138 = sphi 0, %s137
      %s152 = sphi 0, %s138
      %s156 = sphi 0, %s156
      %s158 = sphi 0, %s156
      %s159 = sphi 0, %s158
      %s173 = sphi 0, %s159
      %s177 = sphi 0, %s177
      %s179 = sphi 0, %s177
      %s180 = sphi 0, %s179
      %s194 = sphi 0, %s180
      %s198 = sphi 0, %s198
      %s200 = sphi 0, %s198
      %s201 = sphi 0, %s200
      %s215 = sphi 0, %s201
      %s219 = sphi 0, %s219
      %s221 = sphi 0, %s219
      %s222 = sphi 0, %s221
      %s236 = sphi 0, %s222
      %s240 = sphi 0, %s240
      %s242 = sphi 0, %s240
      %s243 = sphi 0, %s242
      %s257 = sphi 0, %s243
      %s261 = sphi 0, %s261
      %s263 = sphi 0, %s261
      %s264 = sphi 0, %s263
      %s278 = sphi 0, %s264
      %s284 = sphi 0, %s286
      %s287 = sphi 0, %s284
      %s288 = sphi 0, %s287
      %s304 = sphi 0, %s288
    $region4: #{tpu_custom_call.1} parent=1 // loop_header_branch
      %31 = sbr.rel (%p29) target = $region8
    $region5: #{tpu_custom_call.1} parent=1 // loop_body
      %s33 = ssub.s32 %s28, 1
      %s34 = ssub.s32 %s28, 2
      %s35 = sadd.s32 %s28, 1
      %s36 = ssub.s32 %s28, %s35
      %p37 = scmp.eq.s32.totalorder %s36, 0
      %s39 = sadd.s32 %s38, 1
      %s40 = scalar_select %p37, %s38, %s39
      %p43 = pneg %p37
      %p44 = scmp.eq.s32.totalorder %s28, 1
      %p45 = por %p43, %p44
      %p46 = scmp.ne.s32.totalorder %s38, %s41
      %p47 = scmp.eq.s32.totalorder %s28, 0
      %p48 = por %p46, %p47
      %p49 = scmp.ne.s32.totalorder %s38, %s41
      %p50 = scmp.eq.s32.totalorder %s33, 1
      %p51 = por %p49, %p50
      %p52 = scmp.ne.s32.totalorder %s41, %s42
      %p53 = scmp.eq.s32.totalorder %s33, 0
      %p54 = por %p52, %p53
      %p55 = scmp.ne.s32.totalorder %s41, %s42
      %p56 = scmp.eq.s32.totalorder %s34, 1
      %p57 = por %p55, %p56
      %p59 = scmp.ne.s32.totalorder %s42, %s58
      %p60 = scmp.eq.s32.totalorder %s34, 0
      %p61 = por %p59, %p60
      %s62 = ssub.s32 %s28, %s35
      %p63 = scmp.eq.s32.totalorder %s62, 0
      %s65 = sadd.s32 %s64, 1
      %s66 = scalar_select %p63, %s64, %s65
      %p69 = pneg %p63
      %p70 = scmp.eq.s32.totalorder %s28, 1
      %p71 = por %p69, %p70
      %p72 = scmp.ne.s32.totalorder %s64, %s67
      %p73 = scmp.eq.s32.totalorder %s28, 0
      %p74 = por %p72, %p73
      %p75 = scmp.ne.s32.totalorder %s64, %s67
      %p76 = scmp.eq.s32.totalorder %s33, 1
      %p77 = por %p75, %p76
      %p78 = scmp.ne.s32.totalorder %s67, %s68
      %p79 = scmp.eq.s32.totalorder %s33, 0
      %p80 = por %p78, %p79
      %p81 = scmp.ne.s32.totalorder %s67, %s68
      %p82 = scmp.eq.s32.totalorder %s34, 1
      %p83 = por %p81, %p82
      %p85 = scmp.ne.s32.totalorder %s68, %s84
      %p86 = scmp.eq.s32.totalorder %s34, 0
      %p87 = por %p85, %p86
      %s88 = ssub.s32 %s28, %s35
      %p89 = scmp.eq.s32.totalorder %s88, 0
      %s91 = sadd.s32 %s90, 1
      %s92 = scalar_select %p89, %s90, %s91
      %p95 = pneg %p89
      %p96 = scmp.eq.s32.totalorder %s28, 1
      %p97 = por %p95, %p96
      %p98 = scmp.ne.s32.totalorder %s90, %s93
      %p99 = scmp.eq.s32.totalorder %s28, 0
      %p100 = por %p98, %p99
      %p101 = scmp.ne.s32.totalorder %s90, %s93
      %p102 = scmp.eq.s32.totalorder %s33, 1
      %p103 = por %p101, %p102
      %p104 = scmp.ne.s32.totalorder %s93, %s94
      %p105 = scmp.eq.s32.totalorder %s33, 0
      %p106 = por %p104, %p105
      %p107 = scmp.ne.s32.totalorder %s93, %s94
      %p108 = scmp.eq.s32.totalorder %s34, 1
      %p109 = por %p107, %p108
      %p111 = scmp.ne.s32.totalorder %s94, %s110
      %p112 = scmp.eq.s32.totalorder %s34, 0
      %p113 = por %p111, %p112
      %s115 = sadd.s32 %s114, 1
      %p118 = scmp.eq.s32.totalorder %s28, 1
      %p119 = scmp.ne.s32.totalorder %s114, %s116
      %p120 = scmp.eq.s32.totalorder %s28, 0
      %p121 = por %p119, %p120
      %p122 = scmp.ne.s32.totalorder %s114, %s116
      %p123 = scmp.eq.s32.totalorder %s33, 1
      %p124 = por %p122, %p123
      %p125 = scmp.ne.s32.totalorder %s116, %s117
      %p126 = scmp.eq.s32.totalorder %s33, 0
      %p127 = por %p125, %p126
      %p128 = scmp.ne.s32.totalorder %s116, %s117
      %p129 = scmp.eq.s32.totalorder %s34, 1
      %p130 = por %p128, %p129
      %p132 = scmp.ne.s32.totalorder %s117, %s131
      %p133 = scmp.eq.s32.totalorder %s34, 0
      %p134 = por %p132, %p133
      %s136 = sadd.s32 %s135, 1
      %p139 = scmp.eq.s32.totalorder %s28, 1
      %p140 = scmp.ne.s32.totalorder %s135, %s137
      %p141 = scmp.eq.s32.totalorder %s28, 0
      %p142 = por %p140, %p141
      %p143 = scmp.ne.s32.totalorder %s135, %s137
      %p144 = scmp.eq.s32.totalorder %s33, 1
      %p145 = por %p143, %p144
      %p146 = scmp.ne.s32.totalorder %s137, %s138
      %p147 = scmp.eq.s32.totalorder %s33, 0
      %p148 = por %p146, %p147
      %p149 = scmp.ne.s32.totalorder %s137, %s138
      %p150 = scmp.eq.s32.totalorder %s34, 1
      %p151 = por %p149, %p150
      %p153 = scmp.ne.s32.totalorder %s138, %s152
      %p154 = scmp.eq.s32.totalorder %s34, 0
      %p155 = por %p153, %p154
      %s157 = sadd.s32 %s156, 1
      %p160 = scmp.eq.s32.totalorder %s28, 1
      %p161 = scmp.ne.s32.totalorder %s156, %s158
      %p162 = scmp.eq.s32.totalorder %s28, 0
      %p163 = por %p161, %p162
      %p164 = scmp.ne.s32.totalorder %s156, %s158
      %p165 = scmp.eq.s32.totalorder %s33, 1
      %p166 = por %p164, %p165
      %p167 = scmp.ne.s32.totalorder %s158, %s159
      %p168 = scmp.eq.s32.totalorder %s33, 0
      %p169 = por %p167, %p168
      %p170 = scmp.ne.s32.totalorder %s158, %s159
      %p171 = scmp.eq.s32.totalorder %s34, 1
      %p172 = por %p170, %p171
      %p174 = scmp.ne.s32.totalorder %s159, %s173
      %p175 = scmp.eq.s32.totalorder %s34, 0
      %p176 = por %p174, %p175
      %s178 = sadd.s32 %s177, 1
      %p181 = scmp.eq.s32.totalorder %s28, 1
      %p182 = scmp.ne.s32.totalorder %s177, %s179
      %p183 = scmp.eq.s32.totalorder %s28, 0
      %p184 = por %p182, %p183
      %p185 = scmp.ne.s32.totalorder %s177, %s179
      %p186 = scmp.eq.s32.totalorder %s33, 1
      %p187 = por %p185, %p186
      %p188 = scmp.ne.s32.totalorder %s179, %s180
      %p189 = scmp.eq.s32.totalorder %s33, 0
      %p190 = por %p188, %p189
      %p191 = scmp.ne.s32.totalorder %s179, %s180
      %p192 = scmp.eq.s32.totalorder %s34, 1
      %p193 = por %p191, %p192
      %p195 = scmp.ne.s32.totalorder %s180, %s194
      %p196 = scmp.eq.s32.totalorder %s34, 0
      %p197 = por %p195, %p196
      %s199 = sadd.s32 %s198, 1
      %p202 = scmp.eq.s32.totalorder %s28, 1
      %p203 = scmp.ne.s32.totalorder %s198, %s200
      %p204 = scmp.eq.s32.totalorder %s28, 0
      %p205 = por %p203, %p204
      %p206 = scmp.ne.s32.totalorder %s198, %s200
      %p207 = scmp.eq.s32.totalorder %s33, 1
      %p208 = por %p206, %p207
      %p209 = scmp.ne.s32.totalorder %s200, %s201
      %p210 = scmp.eq.s32.totalorder %s33, 0
      %p211 = por %p209, %p210
      %p212 = scmp.ne.s32.totalorder %s200, %s201
      %p213 = scmp.eq.s32.totalorder %s34, 1
      %p214 = por %p212, %p213
      %p216 = scmp.ne.s32.totalorder %s201, %s215
      %p217 = scmp.eq.s32.totalorder %s34, 0
      %p218 = por %p216, %p217
      %s220 = sadd.s32 %s219, 1
      %p223 = scmp.eq.s32.totalorder %s28, 1
      %p224 = scmp.ne.s32.totalorder %s219, %s221
      %p225 = scmp.eq.s32.totalorder %s28, 0
      %p226 = por %p224, %p225
      %p227 = scmp.ne.s32.totalorder %s219, %s221
      %p228 = scmp.eq.s32.totalorder %s33, 1
      %p229 = por %p227, %p228
      %p230 = scmp.ne.s32.totalorder %s221, %s222
      %p231 = scmp.eq.s32.totalorder %s33, 0
      %p232 = por %p230, %p231
      %p233 = scmp.ne.s32.totalorder %s221, %s222
      %p234 = scmp.eq.s32.totalorder %s34, 1
      %p235 = por %p233, %p234
      %p237 = scmp.ne.s32.totalorder %s222, %s236
      %p238 = scmp.eq.s32.totalorder %s34, 0
      %p239 = por %p237, %p238
      %s241 = sadd.s32 %s240, 1
      %p244 = scmp.eq.s32.totalorder %s28, 1
      %p245 = scmp.ne.s32.totalorder %s240, %s242
      %p246 = scmp.eq.s32.totalorder %s28, 0
      %p247 = por %p245, %p246
      %p248 = scmp.ne.s32.totalorder %s240, %s242
      %p249 = scmp.eq.s32.totalorder %s33, 1
      %p250 = por %p248, %p249
      %p251 = scmp.ne.s32.totalorder %s242, %s243
      %p252 = scmp.eq.s32.totalorder %s33, 0
      %p253 = por %p251, %p252
      %p254 = scmp.ne.s32.totalorder %s242, %s243
      %p255 = scmp.eq.s32.totalorder %s34, 1
      %p256 = por %p254, %p255
      %p258 = scmp.ne.s32.totalorder %s243, %s257
      %p259 = scmp.eq.s32.totalorder %s34, 0
      %p260 = por %p258, %p259
      %s262 = sadd.s32 %s261, 1
      %p265 = scmp.eq.s32.totalorder %s28, 1
      %p266 = scmp.ne.s32.totalorder %s261, %s263
      %p267 = scmp.eq.s32.totalorder %s28, 0
      %p268 = por %p266, %p267
      %p269 = scmp.ne.s32.totalorder %s261, %s263
      %p270 = scmp.eq.s32.totalorder %s33, 1
      %p271 = por %p269, %p270
      %p272 = scmp.ne.s32.totalorder %s263, %s264
      %p273 = scmp.eq.s32.totalorder %s33, 0
      %p274 = por %p272, %p273
      %p275 = scmp.ne.s32.totalorder %s263, %s264
      %p276 = scmp.eq.s32.totalorder %s34, 1
      %p277 = por %p275, %p276
      %p279 = scmp.ne.s32.totalorder %s264, %s278
      %p280 = scmp.eq.s32.totalorder %s34, 0
      %p281 = por %p279, %p280
      %s282 = ssub.s32 %s28, %s35
      %p283 = scmp.eq.s32.totalorder %s282, 0
      %s285 = sadd.s32 %s284, 1
      %s286 = scalar_select %p283, %s284, %s285
      %p289 = pneg %p283
      %p290 = scmp.eq.s32.totalorder %s28, 1
      %p291 = por %p289, %p290
      %p292 = scmp.ne.s32.totalorder %s284, %s287
      %p293 = scmp.eq.s32.totalorder %s28, 0
      %p294 = por %p292, %p293
      %p295 = scmp.ne.s32.totalorder %s284, %s287
      %p296 = scmp.eq.s32.totalorder %s33, 1
      %p297 = por %p295, %p296
      %p298 = scmp.ne.s32.totalorder %s287, %s288
      %p299 = scmp.eq.s32.totalorder %s33, 0
      %p300 = por %p298, %p299
      %p301 = scmp.ne.s32.totalorder %s287, %s288
      %p302 = scmp.eq.s32.totalorder %s34, 1
      %p303 = por %p301, %p302
      %p305 = scmp.ne.s32.totalorder %s288, %s304
      %p306 = scmp.eq.s32.totalorder %s34, 0
      %p307 = por %p305, %p306
      %p308 = scmp.le.s32.totalorder 1, %s28
      %p309 = scmp.lt.s32.totalorder %s28, 3
      %p310 = pnand %p308, %p309
      %p311 = pneg %p310
      // Predicated region
      $region9: #{tpu_custom_call.1} parent=5 // pred_check
        _
      $region10: #{tpu_custom_call.1} parent=5 // pred_check_branch
        %313 = sbr.rel (%p310) target = $region12
      $region11: #{tpu_custom_call.1} parent=5 // pred_region
        %s314 = ssub.s32 %s28, 1
        // Predicated region
        $region13: #{tpu_custom_call.1} parent=11 // pred_check
          %p315 = pneg %p127
        $region14: #{tpu_custom_call.1} parent=11 // pred_check_branch
          %317 = sbr.rel (%p315) target = $region16
        $region15: #{tpu_custom_call.1} parent=11 // pred_region
          %319 = vsyncadd [#allocation9], 0
          %s320 = sshll.u32 %s3, 4
          %s321 = int_to_ptr.hbm [resolvable:$true] %s320
          %s322 = sshll.u32 [#allocation8], 4
          %s323 = int_to_ptr.vmem [resolvable:$true] %s322
          %328 = dma.hbm_to_vmem [thread:$0]  %s321, 256, %s323, [#allocation9], 64, 64, 4
        $region16: #{tpu_custom_call.1} parent=11 // pred_fallthru
          _
        // Predicated region
        $region17: #{tpu_custom_call.1} parent=11 // pred_check
          %p329 = pneg %p148
        $region18: #{tpu_custom_call.1} parent=11 // pred_check_branch
          %331 = sbr.rel (%p329) target = $region20
        $region19: #{tpu_custom_call.1} parent=11 // pred_region
          %333 = vsyncadd [#allocation9], 0
          %s334 = sshll.u32 %s4, 4
          %s335 = int_to_ptr.hbm [resolvable:$true] %s334
          %s336 = sshll.u32 [#allocation10], 4
          %s337 = int_to_ptr.vmem [resolvable:$true] %s336
          %342 = dma.hbm_to_vmem [thread:$0]  %s335, 256, %s337, [#allocation9], 64, 64, 4
        $region20: #{tpu_custom_call.1} parent=11 // pred_fallthru
          _
        // Predicated region
        $region21: #{tpu_custom_call.1} parent=11 // pred_check
          %p343 = pneg %p169
        $region22: #{tpu_custom_call.1} parent=11 // pred_check_branch
          %345 = sbr.rel (%p343) target = $region24
        $region23: #{tpu_custom_call.1} parent=11 // pred_region
          %347 = vsyncadd [#allocation12], 0
          %s348 = sshll.u32 %s5, 4
          %s349 = int_to_ptr.hbm [resolvable:$true] %s348
          %s350 = sshll.u32 [#allocation11], 4
          %s351 = int_to_ptr.vmem [resolvable:$true] %s350
          %356 = dma.hbm_to_vmem [thread:$0]  %s349, 256, %s351, [#allocation12], 64, 64, 4
        $region24: #{tpu_custom_call.1} parent=11 // pred_fallthru
          _
        // Predicated region
        $region25: #{tpu_custom_call.1} parent=11 // pred_check
          %p357 = pneg %p190
        $region26: #{tpu_custom_call.1} parent=11 // pred_check_branch
          %359 = sbr.rel (%p357) target = $region28
        $region27: #{tpu_custom_call.1} parent=11 // pred_region
          %361 = vsyncadd [#allocation12], 0
          %s362 = sshll.u32 %s6, 4
          %s363 = int_to_ptr.hbm [resolvable:$true] %s362
          %s364 = sshll.u32 [#allocation13], 4
          %s365 = int_to_ptr.vmem [resolvable:$true] %s364
          %370 = dma.hbm_to_vmem [thread:$0]  %s363, 256, %s365, [#allocation12], 64, 64, 4
        $region28: #{tpu_custom_call.1} parent=11 // pred_fallthru
          _
        // Predicated region
        $region29: #{tpu_custom_call.1} parent=11 // pred_check
          %p371 = pneg %p211
        $region30: #{tpu_custom_call.1} parent=11 // pred_check_branch
          %373 = sbr.rel (%p371) target = $region32
        $region31: #{tpu_custom_call.1} parent=11 // pred_region
          _
        $region32: #{tpu_custom_call.1} parent=11 // pred_fallthru
          _
        // Predicated region
        $region33: #{tpu_custom_call.1} parent=11 // pred_check
          %p374 = pneg %p232
        $region34: #{tpu_custom_call.1} parent=11 // pred_check_branch
          %376 = sbr.rel (%p374) target = $region36
        $region35: #{tpu_custom_call.1} parent=11 // pred_region
          _
        $region36: #{tpu_custom_call.1} parent=11 // pred_fallthru
          _
        // Predicated region
        $region37: #{tpu_custom_call.1} parent=11 // pred_check
          %p377 = pneg %p253
        $region38: #{tpu_custom_call.1} parent=11 // pred_check_branch
          %379 = sbr.rel (%p377) target = $region40
        $region39: #{tpu_custom_call.1} parent=11 // pred_region
          _
        $region40: #{tpu_custom_call.1} parent=11 // pred_fallthru
          _
        // Predicated region
        $region41: #{tpu_custom_call.1} parent=11 // pred_check
          %p380 = pneg %p274
        $region42: #{tpu_custom_call.1} parent=11 // pred_check_branch
          %382 = sbr.rel (%p380) target = $region44
        $region43: #{tpu_custom_call.1} parent=11 // pred_region
          _
        $region44: #{tpu_custom_call.1} parent=11 // pred_fallthru
          _
      $region12: #{tpu_custom_call.1} parent=5 // pred_fallthru
        _
      %p383 = scmp.lt.s32.totalorder %s28, 2
      // Predicated region
      $region45: #{tpu_custom_call.1} parent=5 // pred_check
        %p384 = pneg %p383
      $region46: #{tpu_custom_call.1} parent=5 // pred_check_branch
        %386 = sbr.rel (%p384) target = $region48
      $region47: #{tpu_custom_call.1} parent=5 // pred_region
        // Predicated region
        $region49: #{tpu_custom_call.1} parent=47 // pred_check
          %p387 = pneg %p48
        $region50: #{tpu_custom_call.1} parent=47 // pred_check_branch
          %389 = sbr.rel (%p387) target = $region52
        $region51: #{tpu_custom_call.1} parent=47 // pred_region
          %s390 = sand.u32 %s38, 1
          %s391 = scalar_lea.sflag [#allocation3], %s390
          %s392 = sand.u32 %s38, 1
          %s393 = smul.addr %s392, 8
          %s394 = scalar_lea.vmem [#allocation2], %s393
          %396 = vsyncadd %s391, 0
          %s397 = smul.addr %s28, 8
          %s398 = scalar_lea.hbm %s0, %s397
          %s400 = sshll.u32 %s398, 4
          %s401 = int_to_ptr.hbm [resolvable:$true] %s400
          %s402 = sshll.u32 %s394, 4
          %s403 = int_to_ptr.vmem [resolvable:$true] %s402
          %405 = dma.hbm_to_vmem [thread:$0]  %s401, 128, %s403, %s391
        $region52: #{tpu_custom_call.1} parent=47 // pred_fallthru
          _
        // Predicated region
        $region53: #{tpu_custom_call.1} parent=47 // pred_check
          %p406 = pneg %p74
        $region54: #{tpu_custom_call.1} parent=47 // pred_check_branch
          %408 = sbr.rel (%p406) target = $region56
        $region55: #{tpu_custom_call.1} parent=47 // pred_region
          %s409 = sand.u32 %s28, 1
          %s410 = scalar_lea.sflag [#allocation6], %s409
          %s411 = sand.u32 %s64, 1
          %s412 = smul.addr %s411, 8
          %s413 = scalar_lea.vmem [#allocation5], %s412
          %415 = vsyncadd %s410, 0
          %s416 = smul.addr %s28, 8
          %s417 = scalar_lea.hbm %s1, %s416
          %s419 = sshll.u32 %s417, 4
          %s420 = int_to_ptr.hbm [resolvable:$true] %s419
          %s421 = sshll.u32 %s413, 4
          %s422 = int_to_ptr.vmem [resolvable:$true] %s421
          %424 = dma.hbm_to_vmem [thread:$0]  %s420, 128, %s422, %s410
        $region56: #{tpu_custom_call.1} parent=47 // pred_fallthru
          _
        // Predicated region
        $region57: #{tpu_custom_call.1} parent=47 // pred_check
          %p425 = pneg %p100
        $region58: #{tpu_custom_call.1} parent=47 // pred_check_branch
          %427 = sbr.rel (%p425) target = $region60
        $region59: #{tpu_custom_call.1} parent=47 // pred_region
          %s428 = sand.u32 %s28, 1
          %s429 = scalar_lea.sflag [#allocation6], %s428
          %s430 = sand.u32 %s90, 1
          %s431 = smul.addr %s430, 8
          %s432 = scalar_lea.vmem [#allocation7], %s431
          %434 = vsyncadd %s429, 0
          %s435 = smul.addr %s28, 8
          %s436 = scalar_lea.hbm %s2, %s435
          %s438 = sshll.u32 %s436, 4
          %s439 = int_to_ptr.hbm [resolvable:$true] %s438
          %s440 = sshll.u32 %s432, 4
          %s441 = int_to_ptr.vmem [resolvable:$true] %s440
          %443 = dma.hbm_to_vmem [thread:$0]  %s439, 128, %s441, %s429
        $region60: #{tpu_custom_call.1} parent=47 // pred_fallthru
          _
      $region48: #{tpu_custom_call.1} parent=5 // pred_fallthru
        _
      %p444 = scmp.le.s32.totalorder 1, %s28
      %p445 = scmp.lt.s32.totalorder %s28, 3
      %p446 = pnand %p444, %p445
      %p447 = pneg %p446
      // Predicated region
      $region61: #{tpu_custom_call.1} parent=5 // pred_check
        _
      $region62: #{tpu_custom_call.1} parent=5 // pred_check_branch
        %449 = sbr.rel (%p446) target = $region64
      $region63: #{tpu_custom_call.1} parent=5 // pred_region
        %s450 = ssub.s32 %s28, 1
        %s451 = sand.u32 %s41, 1
        %s452 = scalar_lea.sflag [#allocation3], %s451
        %s453 = sand.u32 %s41, 1
        %s454 = smul.addr %s453, 8
        %s455 = scalar_lea.vmem [#allocation2], %s454
        // Predicated region
        $region65: #{tpu_custom_call.1} parent=63 // pred_check
          %p456 = pneg %p54
        $region66: #{tpu_custom_call.1} parent=63 // pred_check_branch
          %458 = sbr.rel (%p456) target = $region68
        $region67: #{tpu_custom_call.1} parent=63 // pred_region
          %460 = dma.done %s452, 128
        $region68: #{tpu_custom_call.1} parent=63 // pred_fallthru
          _
        %s461 = sand.u32 %s33, 1
        %s462 = scalar_lea.sflag [#allocation6], %s461
        %s463 = sand.u32 %s67, 1
        %s464 = smul.addr %s463, 8
        %s465 = scalar_lea.vmem [#allocation5], %s464
        // Predicated region
        $region69: #{tpu_custom_call.1} parent=63 // pred_check
          %p466 = pneg %p80
        $region70: #{tpu_custom_call.1} parent=63 // pred_check_branch
          %468 = sbr.rel (%p466) target = $region72
        $region71: #{tpu_custom_call.1} parent=63 // pred_region
          %470 = dma.done %s462, 128
        $region72: #{tpu_custom_call.1} parent=63 // pred_fallthru
          _
        %s471 = sand.u32 %s33, 1
        %s472 = scalar_lea.sflag [#allocation6], %s471
        %s473 = sand.u32 %s93, 1
        %s474 = smul.addr %s473, 8
        %s475 = scalar_lea.vmem [#allocation7], %s474
        // Predicated region
        $region73: #{tpu_custom_call.1} parent=63 // pred_check
          %p476 = pneg %p106
        $region74: #{tpu_custom_call.1} parent=63 // pred_check_branch
          %478 = sbr.rel (%p476) target = $region76
        $region75: #{tpu_custom_call.1} parent=63 // pred_region
          %480 = dma.done %s472, 128
        $region76: #{tpu_custom_call.1} parent=63 // pred_fallthru
          _
        // Predicated region
        $region77: #{tpu_custom_call.1} parent=63 // pred_check
          %p481 = pneg %p127
        $region78: #{tpu_custom_call.1} parent=63 // pred_check_branch
          %483 = sbr.rel (%p481) target = $region80
        $region79: #{tpu_custom_call.1} parent=63 // pred_region
          %485 = dma.done [#allocation9], 256
        $region80: #{tpu_custom_call.1} parent=63 // pred_fallthru
          _
        // Predicated region
        $region81: #{tpu_custom_call.1} parent=63 // pred_check
          %p486 = pneg %p148
        $region82: #{tpu_custom_call.1} parent=63 // pred_check_branch
          %488 = sbr.rel (%p486) target = $region84
        $region83: #{tpu_custom_call.1} parent=63 // pred_region
          %490 = dma.done [#allocation9], 256
        $region84: #{tpu_custom_call.1} parent=63 // pred_fallthru
          _
        // Predicated region
        $region85: #{tpu_custom_call.1} parent=63 // pred_check
          %p491 = pneg %p169
        $region86: #{tpu_custom_call.1} parent=63 // pred_check_branch
          %493 = sbr.rel (%p491) target = $region88
        $region87: #{tpu_custom_call.1} parent=63 // pred_region
          %495 = dma.done [#allocation12], 256
        $region88: #{tpu_custom_call.1} parent=63 // pred_fallthru
          _
        // Predicated region
        $region89: #{tpu_custom_call.1} parent=63 // pred_check
          %p496 = pneg %p190
        $region90: #{tpu_custom_call.1} parent=63 // pred_check_branch
          %498 = sbr.rel (%p496) target = $region92
        $region91: #{tpu_custom_call.1} parent=63 // pred_region
          %500 = dma.done [#allocation12], 256
        $region92: #{tpu_custom_call.1} parent=63 // pred_fallthru
          _
        %s501 = sand.u32 %s41, 1
        %s502 = scalar_lea.sflag [#allocation3], %s501
        %s503 = sand.u32 %s41, 1
        %s504 = smul.addr %s503, 8
        %s505 = scalar_lea.vmem [#allocation2], %s504
        %p506 = pneg %p54
        %p507 = pneg %p51
        %s508 = sand.u32 %s33, 1
        %s509 = scalar_lea.sflag [#allocation6], %s508
        %s510 = sand.u32 %s67, 1
        %s511 = smul.addr %s510, 8
        %s512 = scalar_lea.vmem [#allocation5], %s511
        %p513 = pneg %p80
        %p514 = pneg %p77
        %s515 = sand.u32 %s33, 1
        %s516 = scalar_lea.sflag [#allocation6], %s515
        %s517 = sand.u32 %s93, 1
        %s518 = smul.addr %s517, 8
        %s519 = scalar_lea.vmem [#allocation7], %s518
        %p520 = pneg %p106
        %p521 = pneg %p103
        %p522 = pneg %p127
        %p523 = pneg %p124
        %p524 = pneg %p148
        %p525 = pneg %p145
        %p526 = pneg %p169
        %p527 = pneg %p166
        %p528 = pneg %p190
        %p529 = pneg %p187
        %p530 = pneg %p211
        %p531 = pneg %p208
        %p532 = pneg %p232
        %p533 = pneg %p229
        %p534 = pneg %p253
        %p535 = pneg %p250
        %p536 = pneg %p274
        %p537 = pneg %p271
        %p538 = pneg %p300
        %p539 = pneg %p297
        %s540 = sand.u32 %s287, 1
        %s541 = scalar_lea.sflag [#allocation4], %s540
        %s542 = sand.u32 %s287, 1
        %s543 = smul.addr %s542, 8
        %s544 = scalar_lea.vmem [#allocation14], %s543
        %v546 = vld [vmem:[%s455] sm:$0xff]
        %v547 = vpack.c.bf16 %v546, %v546
        %v548 = vld [vmem:[#allocation8] sm:$0xf]
        %v549 = vld [vmem:[#allocation8 + $0x4] sm:$0xf]
        %v550 = vld [vmem:[#allocation8 + $0x8] sm:$0xf]
        %v551 = vld [vmem:[#allocation8 + $0xc] sm:$0xf]
        %v552 = vld [vmem:[%s7] sm:$0x1]
        %v554 = vperm.slane %v552, 0
        %v560 = vunpack.c.l.b16 %v548
        %v561 = vunpack.c.l.b16 %v549
        %v562 = vunpack.c.l.b16 %v550
        %v563 = vunpack.c.l.b16 %v551
        %v564 = vpack.c.b16 %v561, %v560
        %v565 = vpack.c.b16 %v563, %v562
        %vm568 = vcmask 261120
        %v570 = vsel %vm568, %v547, 0
        %572 = vmatpush.bf16.msra.mxu0 0
        %573 = vmatpush.bf16.msra.mxu0 0
        %574 = vmatpush.bf16.msra.mxu0 0
        %575 = vmatpush.bf16.msra.mxu0 0
        %576 = vmatpush.bf16.msra.mxu0 0
        %577 = vmatpush.bf16.msra.mxu0 0
        %578 = vmatpush.bf16.msra.mxu0 %v565
        %579 = vmatpush.bf16.msra.mxu0 %v564
        %580 = vmatmul.bf16.gmra.mxu0 %v570
        %v581 = vpop.f32.mrf.mxu0
        %v582 = vadd.f32 %v554, %v581
        %v583 = vpop.f32.mrf.mxu0
        %584 = vdwg.mxu0
        %v585 = vld [vmem:[%s465] sm:$0xff]
        %v586 = vpack.c.bf16 %v585, %v585
        %v587 = vld [vmem:[#allocation10] sm:$0xf]
        %v588 = vld [vmem:[#allocation10 + $0x4] sm:$0xf]
        %v589 = vld [vmem:[#allocation10 + $0x8] sm:$0xf]
        %v590 = vld [vmem:[#allocation10 + $0xc] sm:$0xf]
        %v591 = vld [vmem:[%s8] sm:$0x1]
        %v593 = vperm.slane %v591, 0
        %v599 = vunpack.c.l.b16 %v587
        %v600 = vunpack.c.l.b16 %v588
        %v601 = vunpack.c.l.b16 %v589
        %v602 = vunpack.c.l.b16 %v590
        %v603 = vpack.c.b16 %v600, %v599
        %v604 = vpack.c.b16 %v602, %v601
        %v608 = vsel %vm568, %v586, 0
        %610 = vmatpush.bf16.msra.mxu0 0
        %611 = vmatpush.bf16.msra.mxu0 0
        %612 = vmatpush.bf16.msra.mxu0 0
        %613 = vmatpush.bf16.msra.mxu0 0
        %614 = vmatpush.bf16.msra.mxu0 0
        %615 = vmatpush.bf16.msra.mxu0 0
        %616 = vmatpush.bf16.msra.mxu0 %v604
        %617 = vmatpush.bf16.msra.mxu0 %v603
        %618 = vmatmul.bf16.gmra.mxu0 %v608
        %v619 = vpop.f32.mrf.mxu0
        %v620 = vadd.f32 %v593, %v619
        %v621 = vpop.f32.mrf.mxu0
        %622 = vdwg.mxu0
        %v623 = vld [vmem:[%s475] sm:$0xff]
        %v624 = vpack.c.bf16 %v623, %v623
        %v625 = vld [vmem:[#allocation11] sm:$0xf]
        %v626 = vld [vmem:[#allocation11 + $0x4] sm:$0xf]
        %v627 = vld [vmem:[#allocation11 + $0x8] sm:$0xf]
        %v628 = vld [vmem:[#allocation11 + $0xc] sm:$0xf]
        %v629 = vld [vmem:[%s9] sm:$0x1]
        %v631 = vperm.slane %v629, 0
        %v637 = vunpack.c.l.b16 %v625
        %v638 = vunpack.c.l.b16 %v626
        %v639 = vunpack.c.l.b16 %v627
        %v640 = vunpack.c.l.b16 %v628
        %v641 = vpack.c.b16 %v638, %v637
        %v642 = vpack.c.b16 %v640, %v639
        %v646 = vsel %vm568, %v624, 0
        %648 = vmatpush.bf16.msra.mxu0 0
        %649 = vmatpush.bf16.msra.mxu0 0
        %650 = vmatpush.bf16.msra.mxu0 0
        %651 = vmatpush.bf16.msra.mxu0 0
        %652 = vmatpush.bf16.msra.mxu0 0
        %653 = vmatpush.bf16.msra.mxu0 0
        %654 = vmatpush.bf16.msra.mxu0 %v642
        %655 = vmatpush.bf16.msra.mxu0 %v641
        %656 = vmatmul.bf16.gmra.mxu0 %v646
        %v657 = vpop.f32.mrf.mxu0
        %v658 = vadd.f32 %v631, %v657
        %v659 = vpop.f32.mrf.mxu0
        %660 = vdwg.mxu0
        %v661 = vpack.c.bf16 %v582, %v582
        %v662 = vpack.c.bf16 %v620, %v620
        %v663 = vpack.c.bf16 %v658, %v658
        %vm664 = vcmask 64512
        %v666 = vsel %vm664, %v661, 0
        %v669 = vsel %vm664, %v662, 0
        %671 = vmatpush.bf16.xpose.msra.mxu0 0
        %672 = vmatpush.bf16.xpose.msra.mxu0 0
        %673 = vmatpush.bf16.xpose.msra.mxu0 0
        %674 = vmatpush.bf16.xpose.msra.mxu0 0
        %675 = vmatpush.bf16.xpose.msra.mxu0 0
        %676 = vmatpush.bf16.xpose.msra.mxu0 0
        %677 = vmatpush.bf16.xpose.msra.mxu0 0
        %678 = vmatpush.bf16.xpose.msra.mxu0 %v669
        %679 = vmatmul.bf16.gmra.mxu0 %v666
        %v680 = vpop.f32.mrf.mxu0
        %v681 = vadd.f32 0.0, %v680
        %v682 = vpop.f32.mrf.mxu0
        %683 = vdwg.mxu0
        %v684 = vsel %vm664, %v681, -inf
        %685 = vmax.xlane.f32.xlu0 %v684
        %v686 = vpop.xlane.xlu0 %685
        %v687 = vsub.f32 %v681, %v686
        %v688 = vmul.f32 %v687, 1.442695
        %v689 = vpow.pop %v688
        %v690 = vsel %vm664, %v689, 0.0
        %691 = vadd.xlane.f32.xlu0 %v690
        %v692 = vpop.xlane.xlu0 %691
        %v693 = vrcp.pop %v692
        %v694 = vmul.f32 %v692, %v693
        %v695 = vsub.f32 1.0, %v694
        %v696 = vmul.f32 %v693, %v695
        %v697 = vadd.f32 %v693, %v696
        %vm698 = vweird.f32 %v692
        %vm699 = vweird.f32 %v693
        %vm700 = vmor %vm698, %vm699
        %v701 = vsel %vm700, %v693, %v697
        %v702 = vand.u32 2147483647, %v692
        %vm703 = vcmp.eq.f32.partialorder %v702, 8.507059e+37
        %v704 = vand.u32 %v692, 2147483648
        %v705 = vor.u32 1.1754944e-38, %v704
        %v706 = vsel %vm703, %v705, %v701
        %v707 = vmul.f32 %v689, %v706
        %v708 = vpack.c.bf16 %v707, %v707
        %v710 = vsel %vm664, %v708, 0
        %vm712 = vcmask 1043456
        %v714 = vsel %vm712, %v663, 0
        %716 = vmatpush.bf16.msra.mxu0 0
        %717 = vmatpush.bf16.msra.mxu0 0
        %718 = vmatpush.bf16.msra.mxu0 0
        %719 = vmatpush.bf16.msra.mxu0 0
        %720 = vmatpush.bf16.msra.mxu0 0
        %721 = vmatpush.bf16.msra.mxu0 0
        %722 = vmatpush.bf16.msra.mxu0 0
        %723 = vmatpush.bf16.msra.mxu0 %v714
        %724 = vmatmul.bf16.gmra.mxu0 %v710
        %v725 = vpop.f32.mrf.mxu0
        %v726 = vadd.f32 0.0, %v725
        %v727 = vpop.f32.mrf.mxu0
        %728 = vdwg.mxu0
        %v730 = vunpack.c.l.b16 %v661
        %v731 = vpack.c.b16 %v730, %v730
        %732 = vrot.lane.b32.xlu0 %v731, 120
        %v733 = vpop.permute.xlu0 %732
        %v735 = vunpack.c.l.b16 %v662
        %v736 = vpack.c.b16 %v735, %v735
        %737 = vrot.lane.b32.xlu0 %v736, 120
        %v738 = vpop.permute.xlu0 %737
        %v740 = vsel %vm664, %v733, 0
        %v743 = vsel %vm664, %v738, 0
        %745 = vmatpush.bf16.xpose.msra.mxu0 0
        %746 = vmatpush.bf16.xpose.msra.mxu0 0
        %747 = vmatpush.bf16.xpose.msra.mxu0 0
        %748 = vmatpush.bf16.xpose.msra.mxu0 0
        %749 = vmatpush.bf16.xpose.msra.mxu0 0
        %750 = vmatpush.bf16.xpose.msra.mxu0 0
        %751 = vmatpush.bf16.xpose.msra.mxu0 0
        %752 = vmatpush.bf16.xpose.msra.mxu0 %v743
        %753 = vmatmul.bf16.gmra.mxu0 %v740
        %v754 = vpop.f32.mrf.mxu0
        %v755 = vadd.f32 0.0, %v754
        %v756 = vpop.f32.mrf.mxu0
        %757 = vdwg.mxu0
        %v758 = vsel %vm664, %v755, -inf
        %759 = vmax.xlane.f32.xlu0 %v758
        %v760 = vpop.xlane.xlu0 %759
        %v761 = vsub.f32 %v755, %v760
        %v762 = vmul.f32 %v761, 1.442695
        %v763 = vpow.pop %v762
        %v764 = vsel %vm664, %v763, 0.0
        %765 = vadd.xlane.f32.xlu0 %v764
        %v766 = vpop.xlane.xlu0 %765
        %v767 = vrcp.pop %v766
        %v768 = vmul.f32 %v766, %v767
        %v769 = vsub.f32 1.0, %v768
        %v770 = vmul.f32 %v767, %v769
        %v771 = vadd.f32 %v767, %v770
        %vm772 = vweird.f32 %v766
        %vm773 = vweird.f32 %v767
        %vm774 = vmor %vm772, %vm773
        %v775 = vsel %vm774, %v767, %v771
        %v776 = vand.u32 2147483647, %v766
        %vm777 = vcmp.eq.f32.partialorder %v776, 8.507059e+37
        %v778 = vand.u32 %v766, 2147483648
        %v779 = vor.u32 1.1754944e-38, %v778
        %v780 = vsel %vm777, %v779, %v775
        %v781 = vmul.f32 %v763, %v780
        %v782 = vpack.c.bf16 %v781, %v781
        %v784 = vunpack.c.l.b16 %v663
        %v785 = vpack.c.b16 %v784, %v784
        %786 = vrot.lane.b32.xlu0 %v785, 120
        %v787 = vpop.permute.xlu0 %786
        %v789 = vsel %vm664, %v782, 0
        %v792 = vsel %vm712, %v787, 0
        %794 = vmatpush.bf16.msra.mxu0 0
        %795 = vmatpush.bf16.msra.mxu0 0
        %796 = vmatpush.bf16.msra.mxu0 0
        %797 = vmatpush.bf16.msra.mxu0 0
        %798 = vmatpush.bf16.msra.mxu0 0
        %799 = vmatpush.bf16.msra.mxu0 0
        %800 = vmatpush.bf16.msra.mxu0 0
        %801 = vmatpush.bf16.msra.mxu0 %v792
        %802 = vmatmul.bf16.gmra.mxu0 %v789
        %v803 = vpop.f32.mrf.mxu0
        %v804 = vadd.f32 0.0, %v803
        %v805 = vpop.f32.mrf.mxu0
        %806 = vdwg.mxu0
        %807 = vrot.lane.b32.xlu0 %v731, 112
        %v808 = vpop.permute.xlu0 %807
        %809 = vrot.lane.b32.xlu0 %v736, 112
        %v810 = vpop.permute.xlu0 %809
        %v812 = vsel %vm664, %v808, 0
        %v815 = vsel %vm664, %v810, 0
        %817 = vmatpush.bf16.xpose.msra.mxu0 0
        %818 = vmatpush.bf16.xpose.msra.mxu0 0
        %819 = vmatpush.bf16.xpose.msra.mxu0 0
        %820 = vmatpush.bf16.xpose.msra.mxu0 0
        %821 = vmatpush.bf16.xpose.msra.mxu0 0
        %822 = vmatpush.bf16.xpose.msra.mxu0 0
        %823 = vmatpush.bf16.xpose.msra.mxu0 0
        %824 = vmatpush.bf16.xpose.msra.mxu0 %v815
        %825 = vmatmul.bf16.gmra.mxu0 %v812
        %v826 = vpop.f32.mrf.mxu0
        %v827 = vadd.f32 0.0, %v826
        %v828 = vpop.f32.mrf.mxu0
        %829 = vdwg.mxu0
        %v830 = vsel %vm664, %v827, -inf
        %831 = vmax.xlane.f32.xlu0 %v830
        %v832 = vpop.xlane.xlu0 %831
        %v833 = vsub.f32 %v827, %v832
        %v834 = vmul.f32 %v833, 1.442695
        %v835 = vpow.pop %v834
        %v836 = vsel %vm664, %v835, 0.0
        %837 = vadd.xlane.f32.xlu0 %v836
        %v838 = vpop.xlane.xlu0 %837
        %v839 = vrcp.pop %v838
        %v840 = vmul.f32 %v838, %v839
        %v841 = vsub.f32 1.0, %v840
        %v842 = vmul.f32 %v839, %v841
        %v843 = vadd.f32 %v839, %v842
        %vm844 = vweird.f32 %v838
        %vm845 = vweird.f32 %v839
        %vm846 = vmor %vm844, %vm845
        %v847 = vsel %vm846, %v839, %v843
        %v848 = vand.u32 2147483647, %v838
        %vm849 = vcmp.eq.f32.partialorder %v848, 8.507059e+37
        %v850 = vand.u32 %v838, 2147483648
        %v851 = vor.u32 1.1754944e-38, %v850
        %v852 = vsel %vm849, %v851, %v847
        %v853 = vmul.f32 %v835, %v852
        %v854 = vpack.c.bf16 %v853, %v853
        %855 = vrot.lane.b32.xlu0 %v785, 112
        %v856 = vpop.permute.xlu0 %855
        %v858 = vsel %vm664, %v854, 0
        %v861 = vsel %vm712, %v856, 0
        %863 = vmatpush.bf16.msra.mxu0 0
        %864 = vmatpush.bf16.msra.mxu0 0
        %865 = vmatpush.bf16.msra.mxu0 0
        %866 = vmatpush.bf16.msra.mxu0 0
        %867 = vmatpush.bf16.msra.mxu0 0
        %868 = vmatpush.bf16.msra.mxu0 0
        %869 = vmatpush.bf16.msra.mxu0 0
        %870 = vmatpush.bf16.msra.mxu0 %v861
        %871 = vmatmul.bf16.gmra.mxu0 %v858
        %v872 = vpop.f32.mrf.mxu0
        %v873 = vadd.f32 0.0, %v872
        %v874 = vpop.f32.mrf.mxu0
        %875 = vdwg.mxu0
        %876 = vrot.lane.b32.xlu0 %v731, 104
        %v877 = vpop.permute.xlu0 %876
        %878 = vrot.lane.b32.xlu0 %v736, 104
        %v879 = vpop.permute.xlu0 %878
        %v881 = vsel %vm664, %v877, 0
        %v884 = vsel %vm664, %v879, 0
        %886 = vmatpush.bf16.xpose.msra.mxu0 0
        %887 = vmatpush.bf16.xpose.msra.mxu0 0
        %888 = vmatpush.bf16.xpose.msra.mxu0 0
        %889 = vmatpush.bf16.xpose.msra.mxu0 0
        %890 = vmatpush.bf16.xpose.msra.mxu0 0
        %891 = vmatpush.bf16.xpose.msra.mxu0 0
        %892 = vmatpush.bf16.xpose.msra.mxu0 0
        %893 = vmatpush.bf16.xpose.msra.mxu0 %v884
        %894 = vmatmul.bf16.gmra.mxu0 %v881
        %v895 = vpop.f32.mrf.mxu0
        %v896 = vadd.f32 0.0, %v895
        %v897 = vpop.f32.mrf.mxu0
        %898 = vdwg.mxu0
        %v899 = vsel %vm664, %v896, -inf
        %900 = vmax.xlane.f32.xlu0 %v899
        %v901 = vpop.xlane.xlu0 %900
        %v902 = vsub.f32 %v896, %v901
        %v903 = vmul.f32 %v902, 1.442695
        %v904 = vpow.pop %v903
        %v905 = vsel %vm664, %v904, 0.0
        %906 = vadd.xlane.f32.xlu0 %v905
        %v907 = vpop.xlane.xlu0 %906
        %v908 = vrcp.pop %v907
        %v909 = vmul.f32 %v907, %v908
        %v910 = vsub.f32 1.0, %v909
        %v911 = vmul.f32 %v908, %v910
        %v912 = vadd.f32 %v908, %v911
        %vm913 = vweird.f32 %v907
        %vm914 = vweird.f32 %v908
        %vm915 = vmor %vm913, %vm914
        %v916 = vsel %vm915, %v908, %v912
        %v917 = vand.u32 2147483647, %v907
        %vm918 = vcmp.eq.f32.partialorder %v917, 8.507059e+37
        %v919 = vand.u32 %v907, 2147483648
        %v920 = vor.u32 1.1754944e-38, %v919
        %v921 = vsel %vm918, %v920, %v916
        %v922 = vmul.f32 %v904, %v921
        %v923 = vpack.c.bf16 %v922, %v922
        %924 = vrot.lane.b32.xlu0 %v785, 104
        %v925 = vpop.permute.xlu0 %924
        %v927 = vsel %vm664, %v923, 0
        %v930 = vsel %vm712, %v925, 0
        %932 = vmatpush.bf16.msra.mxu0 0
        %933 = vmatpush.bf16.msra.mxu0 0
        %934 = vmatpush.bf16.msra.mxu0 0
        %935 = vmatpush.bf16.msra.mxu0 0
        %936 = vmatpush.bf16.msra.mxu0 0
        %937 = vmatpush.bf16.msra.mxu0 0
        %938 = vmatpush.bf16.msra.mxu0 0
        %939 = vmatpush.bf16.msra.mxu0 %v930
        %940 = vmatmul.bf16.gmra.mxu0 %v927
        %v941 = vpop.f32.mrf.mxu0
        %v942 = vadd.f32 0.0, %v941
        %v943 = vpop.f32.mrf.mxu0
        %944 = vdwg.mxu0
        %946 = vrot.lane.b32.xlu0 %v804, 8
        %v947 = vpop.permute.xlu0 %946
        %950 = vrot.lane.b32.xlu0 %v873, 16
        %v951 = vpop.permute.xlu0 %950
        %954 = vrot.lane.b32.xlu0 %v942, 24
        %v955 = vpop.permute.xlu0 %954
        %v957 = vsel %vm664, %v726, %v947
        %vm958 = vcmask 130048
        %v959 = vsel %vm958, %v957, %v951
        %vm960 = vcmask 195584
        %v961 = vsel %vm960, %v959, %v955
        %v962 = vpack.c.bf16 %v961, %v961
        %v963 = vld [vmem:[#allocation13] sm:$0xf]
        %v964 = vld [vmem:[#allocation13 + $0x4] sm:$0xf]
        %v965 = vld [vmem:[#allocation13 + $0x8] sm:$0xf]
        %v966 = vld [vmem:[#allocation13 + $0xc] sm:$0xf]
        %v967 = vld [vmem:[%s10] sm:$0x1]
        %v969 = vperm.slane %v967, 0
        %v975 = vunpack.c.l.b16 %v963
        %v976 = vunpack.c.l.b16 %v964
        %v977 = vunpack.c.l.b16 %v965
        %v978 = vunpack.c.l.b16 %v966
        %v979 = vpack.c.b16 %v976, %v975
        %v980 = vpack.c.b16 %v978, %v977
        %v984 = vsel %vm568, %v962, 0
        %986 = vmatpush.bf16.msra.mxu0 0
        %987 = vmatpush.bf16.msra.mxu0 0
        %988 = vmatpush.bf16.msra.mxu0 0
        %989 = vmatpush.bf16.msra.mxu0 0
        %990 = vmatpush.bf16.msra.mxu0 0
        %991 = vmatpush.bf16.msra.mxu0 0
        %992 = vmatpush.bf16.msra.mxu0 %v980
        %993 = vmatpush.bf16.msra.mxu0 %v979
        %994 = vmatmul.bf16.gmra.mxu0 %v984
        %v995 = vpop.f32.mrf.mxu0
        %v996 = vadd.f32 %v969, %v995
        %v997 = vpop.f32.mrf.mxu0
        %998 = vdwg.mxu0
        %999 = vst.msk [vmem:[%s544] sm:$0xff] %vm568, %v996
        %s1000 = sand.u32 %s287, 1
        %s1001 = scalar_lea.sflag [#allocation4], %s1000
        %s1002 = sand.u32 %s287, 1
        %s1003 = smul.addr %s1002, 8
        %s1004 = scalar_lea.vmem [#allocation14], %s1003
        // Predicated region
        $region93: #{tpu_custom_call.1} parent=63 // pred_check
          %p1005 = pneg %p297
        $region94: #{tpu_custom_call.1} parent=63 // pred_check_branch
          %1007 = sbr.rel (%p1005) target = $region96
        $region95: #{tpu_custom_call.1} parent=63 // pred_region
          %1009 = vsyncadd %s1001, 0
          %s1010 = smul.addr %s33, 8
          %s1011 = scalar_lea.hbm %s11, %s1010
          %s1013 = sshll.u32 %s1004, 4
          %s1014 = int_to_ptr.vmem [resolvable:$true] %s1013
          %s1015 = sshll.u32 %s1011, 4
          %s1016 = int_to_ptr.hbm [resolvable:$true] %s1015
          %1018 = dma.vmem_to_hbm [thread:$0]  %s1014, 128, %s1016, %s1001
        $region96: #{tpu_custom_call.1} parent=63 // pred_fallthru
          _
      $region64: #{tpu_custom_call.1} parent=5 // pred_fallthru
        _
      %p1019 = scmp.le.s32.totalorder 2, %s28
      // Predicated region
      $region97: #{tpu_custom_call.1} parent=5 // pred_check
        %p1020 = pneg %p1019
      $region98: #{tpu_custom_call.1} parent=5 // pred_check_branch
        %1022 = sbr.rel (%p1020) target = $region100
      $region99: #{tpu_custom_call.1} parent=5 // pred_region
        %s1023 = ssub.s32 %s28, 2
        // Predicated region
        $region101: #{tpu_custom_call.1} parent=99 // pred_check
          %p1024 = pneg %p303
        $region102: #{tpu_custom_call.1} parent=99 // pred_check_branch
          %1026 = sbr.rel (%p1024) target = $region104
        $region103: #{tpu_custom_call.1} parent=99 // pred_region
          %s1027 = sand.u32 %s288, 1
          %s1028 = scalar_lea.sflag [#allocation4], %s1027
          %s1029 = sand.u32 %s288, 1
          %s1030 = smul.addr %s1029, 8
          %s1031 = scalar_lea.vmem [#allocation14], %s1030
          %1033 = dma.done %s1028, 128
        $region104: #{tpu_custom_call.1} parent=99 // pred_fallthru
          _
      $region100: #{tpu_custom_call.1} parent=5 // pred_fallthru
        _
    $region6: #{tpu_custom_call.1} parent=1 // loop_footer
      %s32 = sadd.s32 1, %s28
    $region7: #{tpu_custom_call.1} parent=1 // loop_footer_branch
      %27 = sbr.rel target = $region3
    $region8: #{tpu_custom_call.1} parent=1 // loop_exit
      _
    %1034 = vsyncpa [#allocation3], 1
    %s1035 = scalar_lea.sflag [#allocation3], 1
    %1036 = vsyncpa %s1035, 1
    %1037 = vsyncpa [#allocation6], 1
    %s1038 = scalar_lea.sflag [#allocation6], 1
    %1039 = vsyncpa %s1038, 1
    %1040 = vsyncpa [#allocation9], 1
    %1041 = vsyncpa [#allocation12], 1
    %1042 = vsyncpa [#allocation4], 1
    %s1043 = scalar_lea.sflag [#allocation4], 1
    %1044 = vsyncpa %s1043, 1

// kernel: tpu_custom_call.1
$region0: #{tpu_custom_call.1}
  #allocation0 [shape = 'u32[]', space=smem, size = 0x4, offset = 0x4, fixed_abs, tag = 'smem constant byte address 0x4 - core index']
  #allocation1 [shape = 'u32[72,128]{1,0:T(1,128)}', space=vmem, size = 0x9000, scoped, tag = 'internal scratch']
  %s0 = inlined_call_operand.hbm [shape: f32[2,8,32], index: 0, kind: input, shape index: {}]
  %s1 = inlined_call_operand.hbm [shape: f32[2,8,32], index: 1, kind: input, shape index: {}]
  %s2 = inlined_call_operand.hbm [shape: f32[2,8,32], index: 2, kind: input, shape index: {}]
  %s3 = inlined_call_operand.hbm [shape: bf16[32,32], index: 3, kind: input, shape index: {}]
  %s4 = inlined_call_operand.hbm [shape: bf16[32,32], index: 4, kind: input, shape index: {}]
  %s5 = inlined_call_operand.hbm [shape: bf16[32,32], index: 5, kind: input, shape index: {}]
  %s6 = inlined_call_operand.hbm [shape: bf16[32,32], index: 6, kind: input, shape index: {}]
  %s7 = inlined_call_operand.vmem [shape: f32[1,32], index: 7, kind: input, shape index: {}]
  %s8 = inlined_call_operand.vmem [shape: f32[1,32], index: 8, kind: input, shape index: {}]
  %s9 = inlined_call_operand.vmem [shape: f32[1,32], index: 9, kind: input, shape index: {}]
  %s10 = inlined_call_operand.vmem [shape: f32[1,32], index: 10, kind: input, shape index: {}]
  %s11 = inlined_call_operand.hbm [shape: f32[2,8,32], index: 11, kind: output, shape index: {}]
  %s12 = sld [smem:[#allocation0]]
  $region105: #{tpu_custom_call.1} parent=0
    _
  %s14 = ssub.s32 1, %s12
  %s15 = scalar_select 0, %s14, %s12
  $region1: #{tpu_custom_call.1} parent=0
    #allocation2 [shape = 'u8[8192]{0}', space=vmem, size = 0x2000, scoped, tag = 'input window, operand 0']
    #allocation3 [shape = 's32[2]{0}', space=sflag, size = 0x8, scoped, tag = 'scoped memory for tpu_custom_call.1']
    #allocation4 [shape = 's32[2]{0}', space=sflag, size = 0x8, scoped, tag = 'scoped memory for tpu_custom_call.1']
    #allocation5 [shape = 'u8[8192]{0}', space=vmem, size = 0x2000, scoped, tag = 'input window, operand 1']
    #allocation6 [shape = 's32[2]{0}', space=sflag, size = 0x8, scoped, tag = 'scoped memory for tpu_custom_call.1']
    #allocation7 [shape = 'u8[8192]{0}', space=vmem, size = 0x2000, scoped, tag = 'input window, operand 2']
    #allocation8 [shape = 'u8[8192]{0}', space=vmem, size = 0x2000, scoped, tag = 'input window, operand 3, single buffered']
    #allocation9 [shape = 's32[1]{0}', space=sflag, size = 0x4, scoped, tag = 'scoped memory for tpu_custom_call.1']
    #allocation10 [shape = 'u8[8192]{0}', space=vmem, size = 0x2000, scoped, tag = 'input window, operand 4, single buffered']
    #allocation11 [shape = 'u8[8192]{0}', space=vmem, size = 0x2000, scoped, tag = 'input window, operand 5, single buffered']
    #allocation12 [shape = 's32[1]{0}', space=sflag, size = 0x4, scoped, tag = 'scoped memory for tpu_custom_call.1']
    #allocation13 [shape = 'u8[8192]{0}', space=vmem, size = 0x2000, scoped, tag = 'input window, operand 6, single buffered']
    #allocation14 [shape = 'u8[8192]{0}', space=vmem, size = 0x2000, scoped, tag = 'output window, operand 0']
    %16 = vsyncpa [#allocation3], 0
    %s17 = scalar_lea.sflag [#allocation3], 1
    %18 = vsyncpa %s17, 0
    %19 = vsyncpa [#allocation6], 0
    %s20 = scalar_lea.sflag [#allocation6], 1
    %21 = vsyncpa %s20, 0
    %22 = vsyncpa [#allocation9], 0
    %23 = vsyncpa [#allocation12], 0
    %24 = vsyncpa [#allocation4], 0
    %s25 = scalar_lea.sflag [#allocation4], 1
    %26 = vsyncpa %s25, 0
    loop: start=0, step=1, limit=4
    $region2: #{tpu_custom_call.1} parent=1 // loop_pre_header
      _
    $region3: #{tpu_custom_call.1} parent=1 // loop_header
      %s28 = sphi 0, %s32
      %p29 = scmp.ge.s32.totalorder %s28, 4
      %s38 = sphi 0, %s40
      %s41 = sphi 0, %s38
      %s42 = sphi 0, %s41
      %s58 = sphi 0, %s42
      %s64 = sphi 0, %s66
      %s67 = sphi 0, %s64
      %s68 = sphi 0, %s67
      %s84 = sphi 0, %s68
      %s90 = sphi 0, %s92
      %s93 = sphi 0, %s90
      %s94 = sphi 0, %s93
      %s110 = sphi 0, %s94
      %s114 = sphi 0, %s114
      %s116 = sphi 0, %s114
      %s117 = sphi 0, %s116
      %s131 = sphi 0, %s117
      %s135 = sphi 0, %s135
      %s137 = sphi 0, %s135
      %s138 = sphi 0, %s137
      %s152 = sphi 0, %s138
      %s156 = sphi 0, %s156
      %s158 = sphi 0, %s156
      %s159 = sphi 0, %s158
      %s173 = sphi 0, %s159
      %s177 = sphi 0, %s177
      %s179 = sphi 0, %s177
      %s180 = sphi 0, %s179
      %s194 = sphi 0, %s180
      %s198 = sphi 0, %s198
      %s200 = sphi 0, %s198
      %s201 = sphi 0, %s200
      %s215 = sphi 0, %s201
      %s219 = sphi 0, %s219
      %s221 = sphi 0, %s219
      %s222 = sphi 0, %s221
      %s236 = sphi 0, %s222
      %s240 = sphi 0, %s240
      %s242 = sphi 0, %s240
      %s243 = sphi 0, %s242
      %s257 = sphi 0, %s243
      %s261 = sphi 0, %s261
      %s263 = sphi 0, %s261
      %s264 = sphi 0, %s263
      %s278 = sphi 0, %s264
      %s284 = sphi 0, %s286
      %s287 = sphi 0, %s284
      %s288 = sphi 0, %s287
      %s304 = sphi 0, %s288
    $region4: #{tpu_custom_call.1} parent=1 // loop_header_branch
      %31 = sbr.rel (%p29) target = $region8
    $region5: #{tpu_custom_call.1} parent=1 // loop_body
      %s33 = ssub.s32 %s28, 1
      %s34 = ssub.s32 %s28, 2
      %s35 = sadd.s32 %s28, 1
      %s36 = ssub.s32 %s28, %s35
      %p37 = scmp.eq.s32.totalorder %s36, 0
      %s39 = sadd.s32 %s38, 1
      %s40 = scalar_select %p37, %s38, %s39
      %p43 = pneg %p37
      %p44 = scmp.eq.s32.totalorder %s28, 1
      %p45 = por %p43, %p44
      %p46 = scmp.ne.s32.totalorder %s38, %s41
      %p47 = scmp.eq.s32.totalorder %s28, 0
      %p48 = por %p46, %p47
      %p49 = scmp.ne.s32.totalorder %s38, %s41
      %p50 = scmp.eq.s32.totalorder %s33, 1
      %p51 = por %p49, %p50
      %p52 = scmp.ne.s32.totalorder %s41, %s42
      %p53 = scmp.eq.s32.totalorder %s33, 0
      %p54 = por %p52, %p53
      %p55 = scmp.ne.s32.totalorder %s41, %s42
      %p56 = scmp.eq.s32.totalorder %s34, 1
      %p57 = por %p55, %p56
      %p59 = scmp.ne.s32.totalorder %s42, %s58
      %p60 = scmp.eq.s32.totalorder %s34, 0
      %p61 = por %p59, %p60
      %s62 = ssub.s32 %s28, %s35
      %p63 = scmp.eq.s32.totalorder %s62, 0
      %s65 = sadd.s32 %s64, 1
      %s66 = scalar_select %p63, %s64, %s65
      %p69 = pneg %p63
      %p70 = scmp.eq.s32.totalorder %s28, 1
      %p71 = por %p69, %p70
      %p72 = scmp.ne.s32.totalorder %s64, %s67
      %p73 = scmp.eq.s32.totalorder %s28, 0
      %p74 = por %p72, %p73
      %p75 = scmp.ne.s32.totalorder %s64, %s67
      %p76 = scmp.eq.s32.totalorder %s33, 1
      %p77 = por %p75, %p76
      %p78 = scmp.ne.s32.totalorder %s67, %s68
      %p79 = scmp.eq.s32.totalorder %s33, 0
      %p80 = por %p78, %p79
      %p81 = scmp.ne.s32.totalorder %s67, %s68
      %p82 = scmp.eq.s32.totalorder %s34, 1
      %p83 = por %p81, %p82
      %p85 = scmp.ne.s32.totalorder %s68, %s84
      %p86 = scmp.eq.s32.totalorder %s34, 0
      %p87 = por %p85, %p86
      %s88 = ssub.s32 %s28, %s35
      %p89 = scmp.eq.s32.totalorder %s88, 0
      %s91 = sadd.s32 %s90, 1
      %s92 = scalar_select %p89, %s90, %s91
      %p95 = pneg %p89
      %p96 = scmp.eq.s32.totalorder %s28, 1
      %p97 = por %p95, %p96
      %p98 = scmp.ne.s32.totalorder %s90, %s93
      %p99 = scmp.eq.s32.totalorder %s28, 0
      %p100 = por %p98, %p99
      %p101 = scmp.ne.s32.totalorder %s90, %s93
      %p102 = scmp.eq.s32.totalorder %s33, 1
      %p103 = por %p101, %p102
      %p104 = scmp.ne.s32.totalorder %s93, %s94
      %p105 = scmp.eq.s32.totalorder %s33, 0
      %p106 = por %p104, %p105
      %p107 = scmp.ne.s32.totalorder %s93, %s94
      %p108 = scmp.eq.s32.totalorder %s34, 1
      %p109 = por %p107, %p108
      %p111 = scmp.ne.s32.totalorder %s94, %s110
      %p112 = scmp.eq.s32.totalorder %s34, 0
      %p113 = por %p111, %p112
      %s115 = sadd.s32 %s114, 1
      %p118 = scmp.eq.s32.totalorder %s28, 1
      %p119 = scmp.ne.s32.totalorder %s114, %s116
      %p120 = scmp.eq.s32.totalorder %s28, 0
      %p121 = por %p119, %p120
      %p122 = scmp.ne.s32.totalorder %s114, %s116
      %p123 = scmp.eq.s32.totalorder %s33, 1
      %p124 = por %p122, %p123
      %p125 = scmp.ne.s32.totalorder %s116, %s117
      %p126 = scmp.eq.s32.totalorder %s33, 0
      %p127 = por %p125, %p126
      %p128 = scmp.ne.s32.totalorder %s116, %s117
      %p129 = scmp.eq.s32.totalorder %s34, 1
      %p130 = por %p128, %p129
      %p132 = scmp.ne.s32.totalorder %s117, %s131
      %p133 = scmp.eq.s32.totalorder %s34, 0
      %p134 = por %p132, %p133
      %s136 = sadd.s32 %s135, 1
      %p139 = scmp.eq.s32.totalorder %s28, 1
      %p140 = scmp.ne.s32.totalorder %s135, %s137
      %p141 = scmp.eq.s32.totalorder %s28, 0
      %p142 = por %p140, %p141
      %p143 = scmp.ne.s32.totalorder %s135, %s137
      %p144 = scmp.eq.s32.totalorder %s33, 1
      %p145 = por %p143, %p144
      %p146 = scmp.ne.s32.totalorder %s137, %s138
      %p147 = scmp.eq.s32.totalorder %s33, 0
      %p148 = por %p146, %p147
      %p149 = scmp.ne.s32.totalorder %s137, %s138
      %p150 = scmp.eq.s32.totalorder %s34, 1
      %p151 = por %p149, %p150
      %p153 = scmp.ne.s32.totalorder %s138, %s152
      %p154 = scmp.eq.s32.totalorder %s34, 0
      %p155 = por %p153, %p154
      %s157 = sadd.s32 %s156, 1
      %p160 = scmp.eq.s32.totalorder %s28, 1
      %p161 = scmp.ne.s32.totalorder %s156, %s158
      %p162 = scmp.eq.s32.totalorder %s28, 0
      %p163 = por %p161, %p162
      %p164 = scmp.ne.s32.totalorder %s156, %s158
      %p165 = scmp.eq.s32.totalorder %s33, 1
      %p166 = por %p164, %p165
      %p167 = scmp.ne.s32.totalorder %s158, %s159
      %p168 = scmp.eq.s32.totalorder %s33, 0
      %p169 = por %p167, %p168
      %p170 = scmp.ne.s32.totalorder %s158, %s159
      %p171 = scmp.eq.s32.totalorder %s34, 1
      %p172 = por %p170, %p171
      %p174 = scmp.ne.s32.totalorder %s159, %s173
      %p175 = scmp.eq.s32.totalorder %s34, 0
      %p176 = por %p174, %p175
      %s178 = sadd.s32 %s177, 1
      %p181 = scmp.eq.s32.totalorder %s28, 1
      %p182 = scmp.ne.s32.totalorder %s177, %s179
      %p183 = scmp.eq.s32.totalorder %s28, 0
      %p184 = por %p182, %p183
      %p185 = scmp.ne.s32.totalorder %s177, %s179
      %p186 = scmp.eq.s32.totalorder %s33, 1
      %p187 = por %p185, %p186
      %p188 = scmp.ne.s32.totalorder %s179, %s180
      %p189 = scmp.eq.s32.totalorder %s33, 0
      %p190 = por %p188, %p189
      %p191 = scmp.ne.s32.totalorder %s179, %s180
      %p192 = scmp.eq.s32.totalorder %s34, 1
      %p193 = por %p191, %p192
      %p195 = scmp.ne.s32.totalorder %s180, %s194
      %p196 = scmp.eq.s32.totalorder %s34, 0
      %p197 = por %p195, %p196
      %s199 = sadd.s32 %s198, 1
      %p202 = scmp.eq.s32.totalorder %s28, 1
      %p203 = scmp.ne.s32.totalorder %s198, %s200
      %p204 = scmp.eq.s32.totalorder %s28, 0
      %p205 = por %p203, %p204
      %p206 = scmp.ne.s32.totalorder %s198, %s200
      %p207 = scmp.eq.s32.totalorder %s33, 1
      %p208 = por %p206, %p207
      %p209 = scmp.ne.s32.totalorder %s200, %s201
      %p210 = scmp.eq.s32.totalorder %s33, 0
      %p211 = por %p209, %p210
      %p212 = scmp.ne.s32.totalorder %s200, %s201
      %p213 = scmp.eq.s32.totalorder %s34, 1
      %p214 = por %p212, %p213
      %p216 = scmp.ne.s32.totalorder %s201, %s215
      %p217 = scmp.eq.s32.totalorder %s34, 0
      %p218 = por %p216, %p217
      %s220 = sadd.s32 %s219, 1
      %p223 = scmp.eq.s32.totalorder %s28, 1
      %p224 = scmp.ne.s32.totalorder %s219, %s221
      %p225 = scmp.eq.s32.totalorder %s28, 0
      %p226 = por %p224, %p225
      %p227 = scmp.ne.s32.totalorder %s219, %s221
      %p228 = scmp.eq.s32.totalorder %s33, 1
      %p229 = por %p227, %p228
      %p230 = scmp.ne.s32.totalorder %s221, %s222
      %p231 = scmp.eq.s32.totalorder %s33, 0
      %p232 = por %p230, %p231
      %p233 = scmp.ne.s32.totalorder %s221, %s222
      %p234 = scmp.eq.s32.totalorder %s34, 1
      %p235 = por %p233, %p234
      %p237 = scmp.ne.s32.totalorder %s222, %s236
      %p238 = scmp.eq.s32.totalorder %s34, 0
      %p239 = por %p237, %p238
      %s241 = sadd.s32 %s240, 1
      %p244 = scmp.eq.s32.totalorder %s28, 1
      %p245 = scmp.ne.s32.totalorder %s240, %s242
      %p246 = scmp.eq.s32.totalorder %s28, 0
      %p247 = por %p245, %p246
      %p248 = scmp.ne.s32.totalorder %s240, %s242
      %p249 = scmp.eq.s32.totalorder %s33, 1
      %p250 = por %p248, %p249
      %p251 = scmp.ne.s32.totalorder %s242, %s243
      %p252 = scmp.eq.s32.totalorder %s33, 0
      %p253 = por %p251, %p252
      %p254 = scmp.ne.s32.totalorder %s242, %s243
      %p255 = scmp.eq.s32.totalorder %s34, 1
      %p256 = por %p254, %p255
      %p258 = scmp.ne.s32.totalorder %s243, %s257
      %p259 = scmp.eq.s32.totalorder %s34, 0
      %p260 = por %p258, %p259
      %s262 = sadd.s32 %s261, 1
      %p265 = scmp.eq.s32.totalorder %s28, 1
      %p266 = scmp.ne.s32.totalorder %s261, %s263
      %p267 = scmp.eq.s32.totalorder %s28, 0
      %p268 = por %p266, %p267
      %p269 = scmp.ne.s32.totalorder %s261, %s263
      %p270 = scmp.eq.s32.totalorder %s33, 1
      %p271 = por %p269, %p270
      %p272 = scmp.ne.s32.totalorder %s263, %s264
      %p273 = scmp.eq.s32.totalorder %s33, 0
      %p274 = por %p272, %p273
      %p275 = scmp.ne.s32.totalorder %s263, %s264
      %p276 = scmp.eq.s32.totalorder %s34, 1
      %p277 = por %p275, %p276
      %p279 = scmp.ne.s32.totalorder %s264, %s278
      %p280 = scmp.eq.s32.totalorder %s34, 0
      %p281 = por %p279, %p280
      %s282 = ssub.s32 %s28, %s35
      %p283 = scmp.eq.s32.totalorder %s282, 0
      %s285 = sadd.s32 %s284, 1
      %s286 = scalar_select %p283, %s284, %s285
      %p289 = pneg %p283
      %p290 = scmp.eq.s32.totalorder %s28, 1
      %p291 = por %p289, %p290
      %p292 = scmp.ne.s32.totalorder %s284, %s287
      %p293 = scmp.eq.s32.totalorder %s28, 0
      %p294 = por %p292, %p293
      %p295 = scmp.ne.s32.totalorder %s284, %s287
      %p296 = scmp.eq.s32.totalorder %s33, 1
      %p297 = por %p295, %p296
      %p298 = scmp.ne.s32.totalorder %s287, %s288
      %p299 = scmp.eq.s32.totalorder %s33, 0
      %p300 = por %p298, %p299
      %p301 = scmp.ne.s32.totalorder %s287, %s288
      %p302 = scmp.eq.s32.totalorder %s34, 1
      %p303 = por %p301, %p302
      %p305 = scmp.ne.s32.totalorder %s288, %s304
      %p306 = scmp.eq.s32.totalorder %s34, 0
      %p307 = por %p305, %p306
      %p308 = scmp.le.s32.totalorder 1, %s28
      %p309 = scmp.lt.s32.totalorder %s28, 3
      %p310 = pnand %p308, %p309
      %p311 = pneg %p310
      // Predicated region
      $region9: #{tpu_custom_call.1} parent=5 // pred_check
        _
      $region10: #{tpu_custom_call.1} parent=5 // pred_check_branch
        %313 = sbr.rel (%p310) target = $region12
      $region11: #{tpu_custom_call.1} parent=5 // pred_region
        %s314 = ssub.s32 %s28, 1
        // Predicated region
        $region13: #{tpu_custom_call.1} parent=11 // pred_check
          %p315 = pneg %p127
        $region14: #{tpu_custom_call.1} parent=11 // pred_check_branch
          %317 = sbr.rel (%p315) target = $region16
        $region15: #{tpu_custom_call.1} parent=11 // pred_region
          %319 = vsyncadd [#allocation9], 0
          %s320 = sshll.u32 %s3, 4
          %s321 = int_to_ptr.hbm [resolvable:$true] %s320
          %s322 = sshll.u32 [#allocation8], 4
          %s323 = int_to_ptr.vmem [resolvable:$true] %s322
          %328 = dma.hbm_to_vmem [thread:$0]  %s321, 256, %s323, [#allocation9], 64, 64, 4
        $region16: #{tpu_custom_call.1} parent=11 // pred_fallthru
          _
        // Predicated region
        $region17: #{tpu_custom_call.1} parent=11 // pred_check
          %p329 = pneg %p148
        $region18: #{tpu_custom_call.1} parent=11 // pred_check_branch
          %331 = sbr.rel (%p329) target = $region20
        $region19: #{tpu_custom_call.1} parent=11 // pred_region
          %333 = vsyncadd [#allocation9], 0
          %s334 = sshll.u32 %s4, 4
          %s335 = int_to_ptr.hbm [resolvable:$true] %s334
          %s336 = sshll.u32 [#allocation10], 4
          %s337 = int_to_ptr.vmem [resolvable:$true] %s336
          %342 = dma.hbm_to_vmem [thread:$0]  %s335, 256, %s337, [#allocation9], 64, 64, 4
        $region20: #{tpu_custom_call.1} parent=11 // pred_fallthru
          _
        // Predicated region
        $region21: #{tpu_custom_call.1} parent=11 // pred_check
          %p343 = pneg %p169
        $region22: #{tpu_custom_call.1} parent=11 // pred_check_branch
          %345 = sbr.rel (%p343) target = $region24
        $region23: #{tpu_custom_call.1} parent=11 // pred_region
          %347 = vsyncadd [#allocation12], 0
          %s348 = sshll.u32 %s5, 4
          %s349 = int_to_ptr.hbm [resolvable:$true] %s348
          %s350 = sshll.u32 [#allocation11], 4
          %s351 = int_to_ptr.vmem [resolvable:$true] %s350
          %356 = dma.hbm_to_vmem [thread:$0]  %s349, 256, %s351, [#allocation12], 64, 64, 4
        $region24: #{tpu_custom_call.1} parent=11 // pred_fallthru
          _
        // Predicated region
        $region25: #{tpu_custom_call.1} parent=11 // pred_check
          %p357 = pneg %p190
        $region26: #{tpu_custom_call.1} parent=11 // pred_check_branch
          %359 = sbr.rel (%p357) target = $region28
        $region27: #{tpu_custom_call.1} parent=11 // pred_region
          %361 = vsyncadd [#allocation12], 0
          %s362 = sshll.u32 %s6, 4
          %s363 = int_to_ptr.hbm [resolvable:$true] %s362
          %s364 = sshll.u32 [#allocation13], 4
          %s365 = int_to_ptr.vmem [resolvable:$true] %s364
          %370 = dma.hbm_to_vmem [thread:$0]  %s363, 256, %s365, [#allocation12], 64, 64, 4
        $region28: #{tpu_custom_call.1} parent=11 // pred_fallthru
          _
        // Predicated region
        $region29: #{tpu_custom_call.1} parent=11 // pred_check
          %p371 = pneg %p211
        $region30: #{tpu_custom_call.1} parent=11 // pred_check_branch
          %373 = sbr.rel (%p371) target = $region32
        $region31: #{tpu_custom_call.1} parent=11 // pred_region
          _
        $region32: #{tpu_custom_call.1} parent=11 // pred_fallthru
          _
        // Predicated region
        $region33: #{tpu_custom_call.1} parent=11 // pred_check
          %p374 = pneg %p232
        $region34: #{tpu_custom_call.1} parent=11 // pred_check_branch
          %376 = sbr.rel (%p374) target = $region36
        $region35: #{tpu_custom_call.1} parent=11 // pred_region
          _
        $region36: #{tpu_custom_call.1} parent=11 // pred_fallthru
          _
        // Predicated region
        $region37: #{tpu_custom_call.1} parent=11 // pred_check
          %p377 = pneg %p253
        $region38: #{tpu_custom_call.1} parent=11 // pred_check_branch
          %379 = sbr.rel (%p377) target = $region40
        $region39: #{tpu_custom_call.1} parent=11 // pred_region
          _
        $region40: #{tpu_custom_call.1} parent=11 // pred_fallthru
          _
        // Predicated region
        $region41: #{tpu_custom_call.1} parent=11 // pred_check
          %p380 = pneg %p274
        $region42: #{tpu_custom_call.1} parent=11 // pred_check_branch
          %382 = sbr.rel (%p380) target = $region44
        $region43: #{tpu_custom_call.1} parent=11 // pred_region
          _
        $region44: #{tpu_custom_call.1} parent=11 // pred_fallthru
          _
      $region12: #{tpu_custom_call.1} parent=5 // pred_fallthru
        _
      %p383 = scmp.lt.s32.totalorder %s28, 2
      // Predicated region
      $region45: #{tpu_custom_call.1} parent=5 // pred_check
        %p384 = pneg %p383
      $region46: #{tpu_custom_call.1} parent=5 // pred_check_branch
        %386 = sbr.rel (%p384) target = $region48
      $region47: #{tpu_custom_call.1} parent=5 // pred_region
        // Predicated region
        $region49: #{tpu_custom_call.1} parent=47 // pred_check
          %p387 = pneg %p48
        $region50: #{tpu_custom_call.1} parent=47 // pred_check_branch
          %389 = sbr.rel (%p387) target = $region52
        $region51: #{tpu_custom_call.1} parent=47 // pred_region
          %s390 = sand.u32 %s38, 1
          %s391 = scalar_lea.sflag [#allocation3], %s390
          %s392 = sand.u32 %s38, 1
          %s393 = smul.addr %s392, 8
          %s394 = scalar_lea.vmem [#allocation2], %s393
          %396 = vsyncadd %s391, 0
          %s397 = smul.addr %s28, 8
          %s398 = scalar_lea.hbm %s0, %s397
          %s400 = sshll.u32 %s398, 4
          %s401 = int_to_ptr.hbm [resolvable:$true] %s400
          %s402 = sshll.u32 %s394, 4
          %s403 = int_to_ptr.vmem [resolvable:$true] %s402
          %405 = dma.hbm_to_vmem [thread:$0]  %s401, 128, %s403, %s391
        $region52: #{tpu_custom_call.1} parent=47 // pred_fallthru
          _
        // Predicated region
        $region53: #{tpu_custom_call.1} parent=47 // pred_check
          %p406 = pneg %p74
        $region54: #{tpu_custom_call.1} parent=47 // pred_check_branch
          %408 = sbr.rel (%p406) target = $region56
        $region55: #{tpu_custom_call.1} parent=47 // pred_region
          %s409 = sand.u32 %s28, 1
          %s410 = scalar_lea.sflag [#allocation6], %s409
          %s411 = sand.u32 %s64, 1
          %s412 = smul.addr %s411, 8
          %s413 = scalar_lea.vmem [#allocation5], %s412
          %415 = vsyncadd %s410, 0
          %s416 = smul.addr %s28, 8
          %s417 = scalar_lea.hbm %s1, %s416
          %s419 = sshll.u32 %s417, 4
          %s420 = int_to_ptr.hbm [resolvable:$true] %s419
          %s421 = sshll.u32 %s413, 4
          %s422 = int_to_ptr.vmem [resolvable:$true] %s421
          %424 = dma.hbm_to_vmem [thread:$0]  %s420, 128, %s422, %s410
        $region56: #{tpu_custom_call.1} parent=47 // pred_fallthru
          _
        // Predicated region
        $region57: #{tpu_custom_call.1} parent=47 // pred_check
          %p425 = pneg %p100
        $region58: #{tpu_custom_call.1} parent=47 // pred_check_branch
          %427 = sbr.rel (%p425) target = $region60
        $region59: #{tpu_custom_call.1} parent=47 // pred_region
          %s428 = sand.u32 %s28, 1
          %s429 = scalar_lea.sflag [#allocation6], %s428
          %s430 = sand.u32 %s90, 1
          %s431 = smul.addr %s430, 8
          %s432 = scalar_lea.vmem [#allocation7], %s431
          %434 = vsyncadd %s429, 0
          %s435 = smul.addr %s28, 8
          %s436 = scalar_lea.hbm %s2, %s435
          %s438 = sshll.u32 %s436, 4
          %s439 = int_to_ptr.hbm [resolvable:$true] %s438
          %s440 = sshll.u32 %s432, 4
          %s441 = int_to_ptr.vmem [resolvable:$true] %s440
          %443 = dma.hbm_to_vmem [thread:$0]  %s439, 128, %s441, %s429
        $region60: #{tpu_custom_call.1} parent=47 // pred_fallthru
          _
      $region48: #{tpu_custom_call.1} parent=5 // pred_fallthru
        _
      %p444 = scmp.le.s32.totalorder 1, %s28
      %p445 = scmp.lt.s32.totalorder %s28, 3
      %p446 = pnand %p444, %p445
      %p447 = pneg %p446
      // Predicated region
      $region61: #{tpu_custom_call.1} parent=5 // pred_check
        _
      $region62: #{tpu_custom_call.1} parent=5 // pred_check_branch
        %449 = sbr.rel (%p446) target = $region64
      $region63: #{tpu_custom_call.1} parent=5 // pred_region
        %s450 = ssub.s32 %s28, 1
        %s451 = sand.u32 %s41, 1
        %s452 = scalar_lea.sflag [#allocation3], %s451
        %s453 = sand.u32 %s41, 1
        %s454 = smul.addr %s453, 8
        %s455 = scalar_lea.vmem [#allocation2], %s454
        // Predicated region
        $region65: #{tpu_custom_call.1} parent=63 // pred_check
          %p456 = pneg %p54
        $region66: #{tpu_custom_call.1} parent=63 // pred_check_branch
          %458 = sbr.rel (%p456) target = $region68
        $region67: #{tpu_custom_call.1} parent=63 // pred_region
          %460 = dma.done %s452, 128
        $region68: #{tpu_custom_call.1} parent=63 // pred_fallthru
          _
        %s461 = sand.u32 %s33, 1
        %s462 = scalar_lea.sflag [#allocation6], %s461
        %s463 = sand.u32 %s67, 1
        %s464 = smul.addr %s463, 8
        %s465 = scalar_lea.vmem [#allocation5], %s464
        // Predicated region
        $region69: #{tpu_custom_call.1} parent=63 // pred_check
          %p466 = pneg %p80
        $region70: #{tpu_custom_call.1} parent=63 // pred_check_branch
          %468 = sbr.rel (%p466) target = $region72
        $region71: #{tpu_custom_call.1} parent=63 // pred_region
          %470 = dma.done %s462, 128
        $region72: #{tpu_custom_call.1} parent=63 // pred_fallthru
          _
        %s471 = sand.u32 %s33, 1
        %s472 = scalar_lea.sflag [#allocation6], %s471
        %s473 = sand.u32 %s93, 1
        %s474 = smul.addr %s473, 8
        %s475 = scalar_lea.vmem [#allocation7], %s474
        // Predicated region
        $region73: #{tpu_custom_call.1} parent=63 // pred_check
          %p476 = pneg %p106
        $region74: #{tpu_custom_call.1} parent=63 // pred_check_branch
          %478 = sbr.rel (%p476) target = $region76
        $region75: #{tpu_custom_call.1} parent=63 // pred_region
          %480 = dma.done %s472, 128
        $region76: #{tpu_custom_call.1} parent=63 // pred_fallthru
          _
        // Predicated region
        $region77: #{tpu_custom_call.1} parent=63 // pred_check
          %p481 = pneg %p127
        $region78: #{tpu_custom_call.1} parent=63 // pred_check_branch
          %483 = sbr.rel (%p481) target = $region80
        $region79: #{tpu_custom_call.1} parent=63 // pred_region
          %485 = dma.done [#allocation9], 256
        $region80: #{tpu_custom_call.1} parent=63 // pred_fallthru
          _
        // Predicated region
        $region81: #{tpu_custom_call.1} parent=63 // pred_check
          %p486 = pneg %p148
        $region82: #{tpu_custom_call.1} parent=63 // pred_check_branch
          %488 = sbr.rel (%p486) target = $region84
        $region83: #{tpu_custom_call.1} parent=63 // pred_region
          %490 = dma.done [#allocation9], 256
        $region84: #{tpu_custom_call.1} parent=63 // pred_fallthru
          _
        // Predicated region
        $region85: #{tpu_custom_call.1} parent=63 // pred_check
          %p491 = pneg %p169
        $region86: #{tpu_custom_call.1} parent=63 // pred_check_branch
          %493 = sbr.rel (%p491) target = $region88
        $region87: #{tpu_custom_call.1} parent=63 // pred_region
          %495 = dma.done [#allocation12], 256
        $region88: #{tpu_custom_call.1} parent=63 // pred_fallthru
          _
        // Predicated region
        $region89: #{tpu_custom_call.1} parent=63 // pred_check
          %p496 = pneg %p190
        $region90: #{tpu_custom_call.1} parent=63 // pred_check_branch
          %498 = sbr.rel (%p496) target = $region92
        $region91: #{tpu_custom_call.1} parent=63 // pred_region
          %500 = dma.done [#allocation12], 256
        $region92: #{tpu_custom_call.1} parent=63 // pred_fallthru
          _
        %s501 = sand.u32 %s41, 1
        %s502 = scalar_lea.sflag [#allocation3], %s501
        %s503 = sand.u32 %s41, 1
        %s504 = smul.addr %s503, 8
        %s505 = scalar_lea.vmem [#allocation2], %s504
        %p506 = pneg %p54
        %p507 = pneg %p51
        %s508 = sand.u32 %s33, 1
        %s509 = scalar_lea.sflag [#allocation6], %s508
        %s510 = sand.u32 %s67, 1
        %s511 = smul.addr %s510, 8
        %s512 = scalar_lea.vmem [#allocation5], %s511
        %p513 = pneg %p80
        %p514 = pneg %p77
        %s515 = sand.u32 %s33, 1
        %s516 = scalar_lea.sflag [#allocation6], %s515
        %s517 = sand.u32 %s93, 1
        %s518 = smul.addr %s517, 8
        %s519 = scalar_lea.vmem [#allocation7], %s518
        %p520 = pneg %p106
        %p521 = pneg %p103
        %p522 = pneg %p127
        %p523 = pneg %p124
        %p524 = pneg %p148
        %p525 = pneg %p145
        %p526 = pneg %p169
        %p527 = pneg %p166
        %p528 = pneg %p190
        %p529 = pneg %p187
        %p530 = pneg %p211
        %p531 = pneg %p208
        %p532 = pneg %p232
        %p533 = pneg %p229
        %p534 = pneg %p253
        %p535 = pneg %p250
        %p536 = pneg %p274
        %p537 = pneg %p271
        %p538 = pneg %p300
        %p539 = pneg %p297
        %s540 = sand.u32 %s287, 1
        %s541 = scalar_lea.sflag [#allocation4], %s540
        %s542 = sand.u32 %s287, 1
        %s543 = smul.addr %s542, 8
        %s544 = scalar_lea.vmem [#allocation14], %s543
        %v546 = vld [vmem:[%s455] sm:$0xff]
        %v547 = vpack.c.bf16 %v546, %v546
        %v548 = vld [vmem:[#allocation8] sm:$0xf]
        %v549 = vld [vmem:[#allocation8 + $0x4] sm:$0xf]
        %v550 = vld [vmem:[#allocation8 + $0x8] sm:$0xf]
        %v551 = vld [vmem:[#allocation8 + $0xc] sm:$0xf]
        %v552 = vld [vmem:[%s7] sm:$0x1]
        %v554 = vperm.slane %v552, 0
        %v560 = vunpack.c.l.b16 %v548
        %v561 = vunpack.c.l.b16 %v549
        %v562 = vunpack.c.l.b16 %v550
        %v563 = vunpack.c.l.b16 %v551
        %v564 = vpack.c.b16 %v561, %v560
        %v565 = vpack.c.b16 %v563, %v562
        %vm568 = vcmask 261120
        %v570 = vsel %vm568, %v547, 0
        %572 = vmatpush.bf16.msra.mxu0 0
        %573 = vmatpush.bf16.msra.mxu0 0
        %574 = vmatpush.bf16.msra.mxu0 0
        %575 = vmatpush.bf16.msra.mxu0 0
        %576 = vmatpush.bf16.msra.mxu0 0
        %577 = vmatpush.bf16.msra.mxu0 0
        %578 = vmatpush.bf16.msra.mxu0 %v565
        %579 = vmatpush.bf16.msra.mxu0 %v564
        %580 = vmatmul.bf16.gmra.mxu0 %v570
        %v581 = vpop.f32.mrf.mxu0
        %v582 = vadd.f32 %v554, %v581
        %v583 = vpop.f32.mrf.mxu0
        %584 = vdwg.mxu0
        %v585 = vld [vmem:[%s465] sm:$0xff]
        %v586 = vpack.c.bf16 %v585, %v585
        %v587 = vld [vmem:[#allocation10] sm:$0xf]
        %v588 = vld [vmem:[#allocation10 + $0x4] sm:$0xf]
        %v589 = vld [vmem:[#allocation10 + $0x8] sm:$0xf]
        %v590 = vld [vmem:[#allocation10 + $0xc] sm:$0xf]
        %v591 = vld [vmem:[%s8] sm:$0x1]
        %v593 = vperm.slane %v591, 0
        %v599 = vunpack.c.l.b16 %v587
        %v600 = vunpack.c.l.b16 %v588
        %v601 = vunpack.c.l.b16 %v589
        %v602 = vunpack.c.l.b16 %v590
        %v603 = vpack.c.b16 %v600, %v599
        %v604 = vpack.c.b16 %v602, %v601
        %v608 = vsel %vm568, %v586, 0
        %610 = vmatpush.bf16.msra.mxu0 0
        %611 = vmatpush.bf16.msra.mxu0 0
        %612 = vmatpush.bf16.msra.mxu0 0
        %613 = vmatpush.bf16.msra.mxu0 0
        %614 = vmatpush.bf16.msra.mxu0 0
        %615 = vmatpush.bf16.msra.mxu0 0
        %616 = vmatpush.bf16.msra.mxu0 %v604
        %617 = vmatpush.bf16.msra.mxu0 %v603
        %618 = vmatmul.bf16.gmra.mxu0 %v608
        %v619 = vpop.f32.mrf.mxu0
        %v620 = vadd.f32 %v593, %v619
        %v621 = vpop.f32.mrf.mxu0
        %622 = vdwg.mxu0
        %v623 = vld [vmem:[%s475] sm:$0xff]
        %v624 = vpack.c.bf16 %v623, %v623
        %v625 = vld [vmem:[#allocation11] sm:$0xf]
        %v626 = vld [vmem:[#allocation11 + $0x4] sm:$0xf]
        %v627 = vld [vmem:[#allocation11 + $0x8] sm:$0xf]
        %v628 = vld [vmem:[#allocation11 + $0xc] sm:$0xf]
        %v629 = vld [vmem:[%s9] sm:$0x1]
        %v631 = vperm.slane %v629, 0
        %v637 = vunpack.c.l.b16 %v625
        %v638 = vunpack.c.l.b16 %v626
        %v639 = vunpack.c.l.b16 %v627
        %v640 = vunpack.c.l.b16 %v628
        %v641 = vpack.c.b16 %v638, %v637
        %v642 = vpack.c.b16 %v640, %v639
        %v646 = vsel %vm568, %v624, 0
        %648 = vmatpush.bf16.msra.mxu0 0
        %649 = vmatpush.bf16.msra.mxu0 0
        %650 = vmatpush.bf16.msra.mxu0 0
        %651 = vmatpush.bf16.msra.mxu0 0
        %652 = vmatpush.bf16.msra.mxu0 0
        %653 = vmatpush.bf16.msra.mxu0 0
        %654 = vmatpush.bf16.msra.mxu0 %v642
        %655 = vmatpush.bf16.msra.mxu0 %v641
        %656 = vmatmul.bf16.gmra.mxu0 %v646
        %v657 = vpop.f32.mrf.mxu0
        %v658 = vadd.f32 %v631, %v657
        %v659 = vpop.f32.mrf.mxu0
        %660 = vdwg.mxu0
        %v661 = vpack.c.bf16 %v582, %v582
        %v662 = vpack.c.bf16 %v620, %v620
        %v663 = vpack.c.bf16 %v658, %v658
        %vm664 = vcmask 64512
        %v666 = vsel %vm664, %v661, 0
        %v669 = vsel %vm664, %v662, 0
        %671 = vmatpush.bf16.xpose.msra.mxu0 0
        %672 = vmatpush.bf16.xpose.msra.mxu0 0
        %673 = vmatpush.bf16.xpose.msra.mxu0 0
        %674 = vmatpush.bf16.xpose.msra.mxu0 0
        %675 = vmatpush.bf16.xpose.msra.mxu0 0
        %676 = vmatpush.bf16.xpose.msra.mxu0 0
        %677 = vmatpush.bf16.xpose.msra.mxu0 0
        %678 = vmatpush.bf16.xpose.msra.mxu0 %v669
        %679 = vmatmul.bf16.gmra.mxu0 %v666
        %v680 = vpop.f32.mrf.mxu0
        %v681 = vadd.f32 0.0, %v680
        %v682 = vpop.f32.mrf.mxu0
        %683 = vdwg.mxu0
        %v684 = vsel %vm664, %v681, -inf
        %685 = vmax.xlane.f32.xlu0 %v684
        %v686 = vpop.xlane.xlu0 %685
        %v687 = vsub.f32 %v681, %v686
        %v688 = vmul.f32 %v687, 1.442695
        %v689 = vpow.pop %v688
        %v690 = vsel %vm664, %v689, 0.0
        %691 = vadd.xlane.f32.xlu0 %v690
        %v692 = vpop.xlane.xlu0 %691
        %v693 = vrcp.pop %v692
        %v694 = vmul.f32 %v692, %v693
        %v695 = vsub.f32 1.0, %v694
        %v696 = vmul.f32 %v693, %v695
        %v697 = vadd.f32 %v693, %v696
        %vm698 = vweird.f32 %v692
        %vm699 = vweird.f32 %v693
        %vm700 = vmor %vm698, %vm699
        %v701 = vsel %vm700, %v693, %v697
        %v702 = vand.u32 2147483647, %v692
        %vm703 = vcmp.eq.f32.partialorder %v702, 8.507059e+37
        %v704 = vand.u32 %v692, 2147483648
        %v705 = vor.u32 1.1754944e-38, %v704
        %v706 = vsel %vm703, %v705, %v701
        %v707 = vmul.f32 %v689, %v706
        %v708 = vpack.c.bf16 %v707, %v707
        %v710 = vsel %vm664, %v708, 0
        %vm712 = vcmask 1043456
        %v714 = vsel %vm712, %v663, 0
        %716 = vmatpush.bf16.msra.mxu0 0
        %717 = vmatpush.bf16.msra.mxu0 0
        %718 = vmatpush.bf16.msra.mxu0 0
        %719 = vmatpush.bf16.msra.mxu0 0
        %720 = vmatpush.bf16.msra.mxu0 0
        %721 = vmatpush.bf16.msra.mxu0 0
        %722 = vmatpush.bf16.msra.mxu0 0
        %723 = vmatpush.bf16.msra.mxu0 %v714
        %724 = vmatmul.bf16.gmra.mxu0 %v710
        %v725 = vpop.f32.mrf.mxu0
        %v726 = vadd.f32 0.0, %v725
        %v727 = vpop.f32.mrf.mxu0
        %728 = vdwg.mxu0
        %v730 = vunpack.c.l.b16 %v661
        %v731 = vpack.c.b16 %v730, %v730
        %732 = vrot.lane.b32.xlu0 %v731, 120
        %v733 = vpop.permute.xlu0 %732
        %v735 = vunpack.c.l.b16 %v662
        %v736 = vpack.c.b16 %v735, %v735
        %737 = vrot.lane.b32.xlu0 %v736, 120
        %v738 = vpop.permute.xlu0 %737
        %v740 = vsel %vm664, %v733, 0
        %v743 = vsel %vm664, %v738, 0
        %745 = vmatpush.bf16.xpose.msra.mxu0 0
        %746 = vmatpush.bf16.xpose.msra.mxu0 0
        %747 = vmatpush.bf16.xpose.msra.mxu0 0
        %748 = vmatpush.bf16.xpose.msra.mxu0 0
        %749 = vmatpush.bf16.xpose.msra.mxu0 0
        %750 = vmatpush.bf16.xpose.msra.mxu0 0
        %751 = vmatpush.bf16.xpose.msra.mxu0 0
        %752 = vmatpush.bf16.xpose.msra.mxu0 %v743
        %753 = vmatmul.bf16.gmra.mxu0 %v740
        %v754 = vpop.f32.mrf.mxu0
        %v755 = vadd.f32 0.0, %v754
        %v756 = vpop.f32.mrf.mxu0
        %757 = vdwg.mxu0
        %v758 = vsel %vm664, %v755, -inf
        %759 = vmax.xlane.f32.xlu0 %v758
        %v760 = vpop.xlane.xlu0 %759
        %v761 = vsub.f32 %v755, %v760
        %v762 = vmul.f32 %v761, 1.442695
        %v763 = vpow.pop %v762
        %v764 = vsel %vm664, %v763, 0.0
        %765 = vadd.xlane.f32.xlu0 %v764
        %v766 = vpop.xlane.xlu0 %765
        %v767 = vrcp.pop %v766
        %v768 = vmul.f32 %v766, %v767
        %v769 = vsub.f32 1.0, %v768
        %v770 = vmul.f32 %v767, %v769
        %v771 = vadd.f32 %v767, %v770
        %vm772 = vweird.f32 %v766
        %vm773 = vweird.f32 %v767
        %vm774 = vmor %vm772, %vm773
        %v775 = vsel %vm774, %v767, %v771
        %v776 = vand.u32 2147483647, %v766
        %vm777 = vcmp.eq.f32.partialorder %v776, 8.507059e+37
        %v778 = vand.u32 %v766, 2147483648
        %v779 = vor.u32 1.1754944e-38, %v778
        %v780 = vsel %vm777, %v779, %v775
        %v781 = vmul.f32 %v763, %v780
        %v782 = vpack.c.bf16 %v781, %v781
        %v784 = vunpack.c.l.b16 %v663
        %v785 = vpack.c.b16 %v784, %v784
        %786 = vrot.lane.b32.xlu0 %v785, 120
        %v787 = vpop.permute.xlu0 %786
        %v789 = vsel %vm664, %v782, 0
        %v792 = vsel %vm712, %v787, 0
        %794 = vmatpush.bf16.msra.mxu0 0
        %795 = vmatpush.bf16.msra.mxu0 0
        %796 = vmatpush.bf16.msra.mxu0 0
        %797 = vmatpush.bf16.msra.mxu0 0
        %798 = vmatpush.bf16.msra.mxu0 0
        %799 = vmatpush.bf16.msra.mxu0 0
        %800 = vmatpush.bf16.msra.mxu0 0
        %801 = vmatpush.bf16.msra.mxu0 %v792
        %802 = vmatmul.bf16.gmra.mxu0 %v789
        %v803 = vpop.f32.mrf.mxu0
        %v804 = vadd.f32 0.0, %v803
        %v805 = vpop.f32.mrf.mxu0
        %806 = vdwg.mxu0
        %807 = vrot.lane.b32.xlu0 %v731, 112
        %v808 = vpop.permute.xlu0 %807
        %809 = vrot.lane.b32.xlu0 %v736, 112
        %v810 = vpop.permute.xlu0 %809
        %v812 = vsel %vm664, %v808, 0
        %v815 = vsel %vm664, %v810, 0
        %817 = vmatpush.bf16.xpose.msra.mxu0 0
        %818 = vmatpush.bf16.xpose.msra.mxu0 0
        %819 = vmatpush.bf16.xpose.msra.mxu0 0
        %820 = vmatpush.bf16.xpose.msra.mxu0 0
        %821 = vmatpush.bf16.xpose.msra.mxu0 0
        %822 = vmatpush.bf16.xpose.msra.mxu0 0
        %823 = vmatpush.bf16.xpose.msra.mxu0 0
        %824 = vmatpush.bf16.xpose.msra.mxu0 %v815
        %825 = vmatmul.bf16.gmra.mxu0 %v812
        %v826 = vpop.f32.mrf.mxu0
        %v827 = vadd.f32 0.0, %v826
        %v828 = vpop.f32.mrf.mxu0
        %829 = vdwg.mxu0
        %v830 = vsel %vm664, %v827, -inf
        %831 = vmax.xlane.f32.xlu0 %v830
        %v832 = vpop.xlane.xlu0 %831
        %v833 = vsub.f32 %v827, %v832
        %v834 = vmul.f32 %v833, 1.442695
        %v835 = vpow.pop %v834
        %v836 = vsel %vm664, %v835, 0.0
        %837 = vadd.xlane.f32.xlu0 %v836
        %v838 = vpop.xlane.xlu0 %837
        %v839 = vrcp.pop %v838
        %v840 = vmul.f32 %v838, %v839
        %v841 = vsub.f32 1.0, %v840
        %v842 = vmul.f32 %v839, %v841
        %v843 = vadd.f32 %v839, %v842
        %vm844 = vweird.f32 %v838
        %vm845 = vweird.f32 %v839
        %vm846 = vmor %vm844, %vm845
        %v847 = vsel %vm846, %v839, %v843
        %v848 = vand.u32 2147483647, %v838
        %vm849 = vcmp.eq.f32.partialorder %v848, 8.507059e+37
        %v850 = vand.u32 %v838, 2147483648
        %v851 = vor.u32 1.1754944e-38, %v850
        %v852 = vsel %vm849, %v851, %v847
        %v853 = vmul.f32 %v835, %v852
        %v854 = vpack.c.bf16 %v853, %v853
        %855 = vrot.lane.b32.xlu0 %v785, 112
        %v856 = vpop.permute.xlu0 %855
        %v858 = vsel %vm664, %v854, 0
        %v861 = vsel %vm712, %v856, 0
        %863 = vmatpush.bf16.msra.mxu0 0
        %864 = vmatpush.bf16.msra.mxu0 0
        %865 = vmatpush.bf16.msra.mxu0 0
        %866 = vmatpush.bf16.msra.mxu0 0
        %867 = vmatpush.bf16.msra.mxu0 0
        %868 = vmatpush.bf16.msra.mxu0 0
        %869 = vmatpush.bf16.msra.mxu0 0
        %870 = vmatpush.bf16.msra.mxu0 %v861
        %871 = vmatmul.bf16.gmra.mxu0 %v858
        %v872 = vpop.f32.mrf.mxu0
        %v873 = vadd.f32 0.0, %v872
        %v874 = vpop.f32.mrf.mxu0
        %875 = vdwg.mxu0
        %876 = vrot.lane.b32.xlu0 %v731, 104
        %v877 = vpop.permute.xlu0 %876
        %878 = vrot.lane.b32.xlu0 %v736, 104
        %v879 = vpop.permute.xlu0 %878
        %v881 = vsel %vm664, %v877, 0
        %v884 = vsel %vm664, %v879, 0
        %886 = vmatpush.bf16.xpose.msra.mxu0 0
        %887 = vmatpush.bf16.xpose.msra.mxu0 0
        %888 = vmatpush.bf16.xpose.msra.mxu0 0
        %889 = vmatpush.bf16.xpose.msra.mxu0 0
        %890 = vmatpush.bf16.xpose.msra.mxu0 0
        %891 = vmatpush.bf16.xpose.msra.mxu0 0
        %892 = vmatpush.bf16.xpose.msra.mxu0 0
        %893 = vmatpush.bf16.xpose.msra.mxu0 %v884
        %894 = vmatmul.bf16.gmra.mxu0 %v881
        %v895 = vpop.f32.mrf.mxu0
        %v896 = vadd.f32 0.0, %v895
        %v897 = vpop.f32.mrf.mxu0
        %898 = vdwg.mxu0
        %v899 = vsel %vm664, %v896, -inf
        %900 = vmax.xlane.f32.xlu0 %v899
        %v901 = vpop.xlane.xlu0 %900
        %v902 = vsub.f32 %v896, %v901
        %v903 = vmul.f32 %v902, 1.442695
        %v904 = vpow.pop %v903
        %v905 = vsel %vm664, %v904, 0.0
        %906 = vadd.xlane.f32.xlu0 %v905
        %v907 = vpop.xlane.xlu0 %906
        %v908 = vrcp.pop %v907
        %v909 = vmul.f32 %v907, %v908
        %v910 = vsub.f32 1.0, %v909
        %v911 = vmul.f32 %v908, %v910
        %v912 = vadd.f32 %v908, %v911
        %vm913 = vweird.f32 %v907
        %vm914 = vweird.f32 %v908
        %vm915 = vmor %vm913, %vm914
        %v916 = vsel %vm915, %v908, %v912
        %v917 = vand.u32 2147483647, %v907
        %vm918 = vcmp.eq.f32.partialorder %v917, 8.507059e+37
        %v919 = vand.u32 %v907, 2147483648
        %v920 = vor.u32 1.1754944e-38, %v919
        %v921 = vsel %vm918, %v920, %v916
        %v922 = vmul.f32 %v904, %v921
        %v923 = vpack.c.bf16 %v922, %v922
        %924 = vrot.lane.b32.xlu0 %v785, 104
        %v925 = vpop.permute.xlu0 %924
        %v927 = vsel %vm664, %v923, 0
        %v930 = vsel %vm712, %v925, 0
        %932 = vmatpush.bf16.msra.mxu0 0
        %933 = vmatpush.bf16.msra.mxu0 0
        %934 = vmatpush.bf16.msra.mxu0 0
        %935 = vmatpush.bf16.msra.mxu0 0
        %936 = vmatpush.bf16.msra.mxu0 0
        %937 = vmatpush.bf16.msra.mxu0 0
        %938 = vmatpush.bf16.msra.mxu0 0
        %939 = vmatpush.bf16.msra.mxu0 %v930
        %940 = vmatmul.bf16.gmra.mxu0 %v927
        %v941 = vpop.f32.mrf.mxu0
        %v942 = vadd.f32 0.0, %v941
        %v943 = vpop.f32.mrf.mxu0
        %944 = vdwg.mxu0
        %946 = vrot.lane.b32.xlu0 %v804, 8
        %v947 = vpop.permute.xlu0 %946
        %950 = vrot.lane.b32.xlu0 %v873, 16
        %v951 = vpop.permute.xlu0 %950
        %954 = vrot.lane.b32.xlu0 %v942, 24
        %v955 = vpop.permute.xlu0 %954
        %v957 = vsel %vm664, %v726, %v947
        %vm958 = vcmask 130048
        %v959 = vsel %vm958, %v957, %v951
        %vm960 = vcmask 195584
        %v961 = vsel %vm960, %v959, %v955
        %v962 = vpack.c.bf16 %v961, %v961
        %v963 = vld [vmem:[#allocation13] sm:$0xf]
        %v964 = vld [vmem:[#allocation13 + $0x4] sm:$0xf]
        %v965 = vld [vmem:[#allocation13 + $0x8] sm:$0xf]
        %v966 = vld [vmem:[#allocation13 + $0xc] sm:$0xf]
        %v967 = vld [vmem:[%s10] sm:$0x1]
        %v969 = vperm.slane %v967, 0
        %v975 = vunpack.c.l.b16 %v963
        %v976 = vunpack.c.l.b16 %v964
        %v977 = vunpack.c.l.b16 %v965
        %v978 = vunpack.c.l.b16 %v966
        %v979 = vpack.c.b16 %v976, %v975
        %v980 = vpack.c.b16 %v978, %v977
        %v984 = vsel %vm568, %v962, 0
        %986 = vmatpush.bf16.msra.mxu0 0
        %987 = vmatpush.bf16.msra.mxu0 0
        %988 = vmatpush.bf16.msra.mxu0 0
        %989 = vmatpush.bf16.msra.mxu0 0
        %990 = vmatpush.bf16.msra.mxu0 0
        %991 = vmatpush.bf16.msra.mxu0 0
        %992 = vmatpush.bf16.msra.mxu0 %v980
        %993 = vmatpush.bf16.msra.mxu0 %v979
        %994 = vmatmul.bf16.gmra.mxu0 %v984
        %v995 = vpop.f32.mrf.mxu0
        %v996 = vadd.f32 %v969, %v995
        %v997 = vpop.f32.mrf.mxu0
        %998 = vdwg.mxu0
        %999 = vst.msk [vmem:[%s544] sm:$0xff] %vm568, %v996
        %s1000 = sand.u32 %s287, 1
        %s1001 = scalar_lea.sflag [#allocation4], %s1000
        %s1002 = sand.u32 %s287, 1
        %s1003 = smul.addr %s1002, 8
        %s1004 = scalar_lea.vmem [#allocation14], %s1003
        // Predicated region
        $region93: #{tpu_custom_call.1} parent=63 // pred_check
          %p1005 = pneg %p297
        $region94: #{tpu_custom_call.1} parent=63 // pred_check_branch
          %1007 = sbr.rel (%p1005) target = $region96
        $region95: #{tpu_custom_call.1} parent=63 // pred_region
          %1009 = vsyncadd %s1001, 0
          %s1010 = smul.addr %s33, 8
          %s1011 = scalar_lea.hbm %s11, %s1010
          %s1013 = sshll.u32 %s1004, 4
          %s1014 = int_to_ptr.vmem [resolvable:$true] %s1013
          %s1015 = sshll.u32 %s1011, 4
          %s1016 = int_to_ptr.hbm [resolvable:$true] %s1015
          %1018 = dma.vmem_to_hbm [thread:$0]  %s1014, 128, %s1016, %s1001
        $region96: #{tpu_custom_call.1} parent=63 // pred_fallthru
          _
      $region64: #{tpu_custom_call.1} parent=5 // pred_fallthru
        _
      %p1019 = scmp.le.s32.totalorder 2, %s28
      // Predicated region
      $region97: #{tpu_custom_call.1} parent=5 // pred_check
        %p1020 = pneg %p1019
      $region98: #{tpu_custom_call.1} parent=5 // pred_check_branch
        %1022 = sbr.rel (%p1020) target = $region100
      $region99: #{tpu_custom_call.1} parent=5 // pred_region
        %s1023 = ssub.s32 %s28, 2
        // Predicated region
        $region101: #{tpu_custom_call.1} parent=99 // pred_check
          %p1024 = pneg %p303
        $region102: #{tpu_custom_call.1} parent=99 // pred_check_branch
          %1026 = sbr.rel (%p1024) target = $region104
        $region103: #{tpu_custom_call.1} parent=99 // pred_region
          %s1027 = sand.u32 %s288, 1
          %s1028 = scalar_lea.sflag [#allocation4], %s1027
          %s1029 = sand.u32 %s288, 1
          %s1030 = smul.addr %s1029, 8
          %s1031 = scalar_lea.vmem [#allocation14], %s1030
          %1033 = dma.done %s1028, 128
        $region104: #{tpu_custom_call.1} parent=99 // pred_fallthru
          _
      $region100: #{tpu_custom_call.1} parent=5 // pred_fallthru
        _
    $region6: #{tpu_custom_call.1} parent=1 // loop_footer
      %s32 = sadd.s32 1, %s28
    $region7: #{tpu_custom_call.1} parent=1 // loop_footer_branch
      %27 = sbr.rel target = $region3
    $region8: #{tpu_custom_call.1} parent=1 // loop_exit
      _
    %1034 = vsyncpa [#allocation3], 1
    %s1035 = scalar_lea.sflag [#allocation3], 1
    %1036 = vsyncpa %s1035, 1
    %1037 = vsyncpa [#allocation6], 1
    %s1038 = scalar_lea.sflag [#allocation6], 1
    %1039 = vsyncpa %s1038, 1
    %1040 = vsyncpa [#allocation9], 1
    %1041 = vsyncpa [#allocation12], 1
    %1042 = vsyncpa [#allocation4], 1
    %s1043 = scalar_lea.sflag [#allocation4], 1
    %1044 = vsyncpa %s1043, 1

</llo_original>
